<compile_context>
chip_gen: v6e
topology: v6e:2x2x1
jax: 0.10.0
libtpu: 0.0.40
codegen_flags: <defaults>
</compile_context>

<pallas_src>
import jax
import jax.numpy as jnp
import numpy as np
from jax.experimental import pallas as pl
from jax.experimental.pallas import tpu as pltpu

EPS = 1e-5
LANE = 128


def _round_up(v, m):
    return (v + m - 1) // m * m


# --------------------------------------------------------------------------- #
# Fused Pallas kernel (one program per block of B_blk images)
# --------------------------------------------------------------------------- #
def forward_pallas(x_nchw, params, cfg):
    n, c_in, hh, ww = x_nchw.shape
    hidden = cfg["hidden"]
    assert len(params["stages"]) == 1, "fused kernel specialized to one stride-2 stage"
    c0, c1 = hidden[0], hidden[1]
    j = cfg["num_joints"]
    ph, pw = cfg["patch"]
    hm_h, hm_w = cfg["heatmap"]
    ho, wo = hh // 2, ww // 2
    assert (ho, wo) == (hm_h, hm_w), "heatmap size mismatch"
    nh, nw = hm_h // ph, hm_w // pw
    num_p = nh * nw
    s_pool = (ph // 2) * (pw // 2)
    cs = params["se_w1"].shape[1]

    st = params["stages"][0]
    stem_s, stem_b = params["stem_bn"]
    dw_s, dw_b = st["dw_bn"]
    pw_s, pw_b = st["pw_bn"]
    head_s, head_b = params["head_bn"]
    pred_s, pred_b = params["pred_bn"]

    # ---- batch blocking (fold batch into the matmul M dim) ------------------ #
    if n <= 8:
        b_blk = n
    else:
        b_blk = next((c for c in (32, 16, 8) if n % c == 0), n)
    assert n % b_blk == 0

    # ---- pack all parameters into ONE (rows, 128) slab ---------------------- #
    # BN scales are constant-folded into the conv weights; only biases remain.
    mats = [
        ("stem", np.asarray(params["stem_w"] * stem_s[None, :], np.float32)),   # (c_in,c0)
        ("dw",   np.asarray(st["dw_w"] * dw_s[None, :], np.float32)),           # (9,c0)
        ("pw",   np.asarray(st["pw_w"] * pw_s[None, :], np.float32)),           # (c0,c1)
        ("se1",  np.asarray(params["se_w1"], np.float32)),                      # (c1,cs)
        ("se2",  np.asarray(params["se_w2"], np.float32)),                      # (cs,c1)
        ("head", np.asarray(params["head_w"] * head_s[None, :], np.float32)),   # (c1,j)
    ]
    vecs = [
        ("b_stem", np.asarray(stem_b, np.float32)),
        ("b_dw",   np.asarray(dw_b, np.float32)),
        ("b_pw",   np.asarray(pw_b, np.float32)),
        ("b_se1",  np.asarray(params["se_b1"], np.float32)),
        ("b_se2",  np.asarray(params["se_b2"], np.float32)),
        ("b_head", np.asarray(head_b, np.float32)),
    ]
    offs, row = {}, 0
    for name, m in mats:
        offs[name] = row
        row = _round_up(row + m.shape[0], 8)          # 8-aligned sublane starts
    for name, v in vecs:
        offs[name] = row
        row += 1
    slab_rows = _round_up(row, 8)
    slab_np = np.zeros((slab_rows, LANE), np.float32)
    for name, m in mats:
        slab_np[offs[name]:offs[name] + m.shape[0], :m.shape[1]] = m
    for name, v in vecs:
        slab_np[offs[name], :v.shape[0]] = v
    slab = jnp.asarray(slab_np)

    # ---- predictor weight/bias maps (vectorized predictor) ------------------ #
    # wmaps[t, y, x] = pred_w[t, patch(y,x)] * pred_s[patch] / S at stride-2 output
    # positions (even y, x), zeroed for the "-1" taps at per-patch boundaries.
    # bmap[y, x] = pred_b[patch] / S at output positions, 0 elsewhere.
    pred_w_np = np.asarray(params["pred_w"], np.float32)    # (9, P)
    pred_s_np = np.asarray(pred_s, np.float32)
    pred_b_np = np.asarray(pred_b, np.float32)
    yy = np.arange(hm_h)
    xx = np.arange(hm_w)
    pidx = (yy[:, None] // ph) * nw + (xx[None, :] // pw)           # (hm_h, hm_w)
    out_pos = (yy[:, None] % 2 == 0) & (xx[None, :] % 2 == 0)
    wmaps = np.zeros((9, hm_h, hm_w), np.float32)
    for kh in range(3):
        for kw in range(3):
            t = kh * 3 + kw
            mask = out_pos.copy()
            if kh == 0:
                mask &= (yy[:, None] % ph != 0)
            if kw == 0:
                mask &= (xx[None, :] % pw != 0)
            wmaps[t] = np.where(mask,
                                pred_w_np[t][pidx] * pred_s_np[pidx] / s_pool, 0.0)
    bmap = np.where(out_pos, pred_b_np[pidx] / s_pool, 0.0).astype(np.float32)
    pm_np = np.concatenate([wmaps, bmap[None]], axis=0)             # (10, hm_h, hm_w)
    pm = jnp.asarray(np.ascontiguousarray(
        np.broadcast_to(pm_np[..., None], (10, hm_h, hm_w, j))).astype(np.float32))

    # ---- input: NCHW -> NHWC, parity split (same byte count as input) ------- #
    x = jnp.transpose(x_nchw, (0, 2, 3, 1)).astype(jnp.float32)
    xpar = (x.reshape(n, ho, 2, wo, 2, c_in)
             .transpose(0, 2, 4, 1, 3, 5)
             .reshape(n, 4, ho, wo, c_in))

    M = b_blk * 4 * ho * wo
    HW = ho * wo

    def kernel(xp_ref, w_ref, pm_ref, out_ref):
        def wrow(name, cols):                 # (1, cols) bias row from the slab
            r = offs[name]
            return w_ref[r:r + 1, 0:cols]

        def wmat(name, rows, cols):           # (rows, cols) weight matrix from the slab
            r = offs[name]
            return w_ref[r:r + rows, 0:cols]

        # ---- stem 1x1 conv (+BN folded) + ReLU on all parity grids, all imgs -- #
        xflat = xp_ref[...].reshape(M, c_in)
        h = jnp.dot(xflat, wmat("stem", c_in, c0), preferred_element_type=jnp.float32)
        h = jnp.maximum(h + wrow("b_stem", c0), 0.0)
        h = h.reshape(b_blk, 4, ho, wo, c0)
        h_ee, h_eo, h_oe, h_oo = h[:, 0], h[:, 1], h[:, 2], h[:, 3]

        # spatial shifts (rows = axis 1, cols = axis 2), zero fill at the edges
        def shift_down(a):    # out[:, i]    = a[:, i-1]
            return jnp.concatenate([jnp.zeros_like(a[:, :1]), a[:, :-1]], axis=1)

        def shift_up(a):      # out[:, i]    = a[:, i+1]
            return jnp.concatenate([a[:, 1:], jnp.zeros_like(a[:, :1])], axis=1)

        def shift_right(a):   # out[:, :, x] = a[:, :, x-1]
            return jnp.concatenate([jnp.zeros_like(a[:, :, :1]), a[:, :, :-1]], axis=2)

        def shift_left(a):    # out[:, :, x] = a[:, :, x+1]
            return jnp.concatenate([a[:, :, 1:], jnp.zeros_like(a[:, :, :1])], axis=2)

        # ---- depthwise 3x3 stride-2 pad-1 conv (+BN folded) + ReLU ------------ #
        dw_w = wmat("dw", 9, c0)

        def wt(kh, kw):
            t = kh * 3 + kw
            return dw_w[t:t + 1, :]           # (1, c0) broadcasts over (b, ho, wo, c0)

        dw = (h_ee * wt(1, 1)
              + h_eo * wt(1, 2) + shift_right(h_eo) * wt(1, 0)
              + h_oe * wt(2, 1) + shift_down(h_oe) * wt(0, 1)
              + h_oo * wt(2, 2) + shift_right(h_oo) * wt(2, 0)
              + shift_down(h_oo) * wt(0, 2)
              + shift_down(shift_right(h_oo)) * wt(0, 0))
        dw = jnp.maximum(dw + wrow("b_dw", c0), 0.0)            # (b, ho, wo, c0)
        dwf = dw.reshape(b_blk * HW, c0)

        # ---- pointwise 1x1 conv (+BN folded) + ReLU --------------------------- #
        z = jnp.dot(dwf, wmat("pw", c0, c1), preferred_element_type=jnp.float32)
        z = jnp.maximum(z + wrow("b_pw", c1), 0.0)              # (b*HW, c1)

        # ---- Squeeze-Excitation (per image) ----------------------------------- #
        z3 = z.reshape(b_blk, HW, c1)
        pooled = jnp.mean(z3, axis=1)                            # (b, c1)
        g = jnp.dot(pooled, wmat("se1", c1, cs), preferred_element_type=jnp.float32)
        g = jnp.maximum(g + wrow("b_se1", cs), 0.0)
        g = jnp.dot(g, wmat("se2", cs, c1), preferred_element_type=jnp.float32)
        g = g + wrow("b_se2", c1)
        gate = 1.0 / (1.0 + jnp.exp(-g))                         # exact sigmoid
        z3 = z3 * gate[:, None, :]
        zf = z3.reshape(b_blk * HW, c1)

        # ---- head 1x1 conv (+BN folded) + ReLU -> heatmap ---------------------- #
        hmf = jnp.dot(zf, wmat("head", c1, j), preferred_element_type=jnp.float32)
        hmf = jnp.maximum(hmf + wrow("b_head", j), 0.0)
        hm = hmf.reshape(b_blk, ho, wo, j)

        # ---- vectorized patch predictor ---------------------------------------- #
        # 9 full-heatmap MACs against precomputed masked weight maps; non-output
        # positions get weight 0 and bias 0, so they contribute 0 after ReLU.
        taps = [
            shift_down(shift_right(hm)), shift_down(hm), shift_down(shift_left(hm)),
            shift_right(hm),             hm,             shift_left(hm),
            shift_up(shift_right(hm)),   shift_up(hm),   shift_up(shift_left(hm)),
        ]
        conv = taps[0] * pm_ref[0]
        for t in range(1, 9):
            conv = conv + taps[t] * pm_ref[t]
        y = jnp.maximum(conv + pm_ref[9], 0.0)                   # (b, ho, wo, j)

        # per-patch sum (1/S of the mean already folded into the maps)
        pieces = []
        for pr in range(nh):
            for pc in range(nw):
                patch = y[:, pr * ph:(pr + 1) * ph, pc * pw:(pc + 1) * pw, :]
                pieces.append(jnp.sum(patch, axis=(1, 2)))        # (b, j)
        out_ref[...] = jnp.concatenate(pieces, axis=-1)           # (b, num_p*j)

    out_flat = pl.pallas_call(
        kernel,
        out_shape=jax.ShapeDtypeStruct((n, num_p * j), jnp.float32),
        grid=(n // b_blk,),
        in_specs=[
            pl.BlockSpec((b_blk, 4, ho, wo, c_in), lambda b: (b, 0, 0, 0, 0)),
            pl.BlockSpec((slab_rows, LANE), lambda b: (0, 0)),
            pl.BlockSpec((10, hm_h, hm_w, j), lambda b: (0, 0, 0, 0)),
        ],
        out_specs=pl.BlockSpec((b_blk, num_p * j), lambda b: (b, 0)),
        compiler_params=pltpu.CompilerParams(
            dimension_semantics=("parallel",),
            vmem_limit_bytes=32 * 1024 * 1024,   # footprint is tiny; safe on v5e/v6e/v7x
        ),
    )(xpar, slab, pm)

    # (n, P*j) -> (n, j, P)  (tiny result; the relayout happens on a few KiB only)
    return jnp.transpose(out_flat.reshape(n, num_p, j), (0, 2, 1))


# --------------------------------------------------------------------------- #
# Pure-jnp reference (same math; used only to sanity-check the fused kernel)
# --------------------------------------------------------------------------- #
def _conv1x1_ref(x2d, w, s, b):
    return jnp.maximum(x2d @ w * s[None] + b[None], 0.0)


def _dwconv_ref(p, w, s, b):
    return jnp.maximum(jnp.sum(p * w[None], axis=1) * s[None] + b[None], 0.0)


def _se_ref(x3d, w1, b1, w2, b2):
    pooled = jnp.mean(x3d, axis=1)
    h = jnp.maximum(pooled @ w1 + b1[None], 0.0)
    s = 1.0 / (1.0 + jnp.exp(-(h @ w2 + b2[None])))
    return x3d * s[:, None, :]


def _predictor_ref(p, w, s, b):
    conv = jnp.sum(p * w[None, None], axis=2)
    y = jnp.maximum(conv * s[None, None] + b[None, None], 0.0)
    return jnp.mean(y, axis=1)


def im2col_3x3_s2_nhwc(x):
    N, H, W, C = x.shape
    xp = jnp.pad(x, ((0, 0), (1, 1), (1, 1), (0, 0)))
    Ho, Wo = H // 2, W // 2
    cols = []
    for kh in range(3):
        for kw in range(3):
            cols.append(xp[:, kh:kh + 2 * Ho:2, kw:kw + 2 * Wo:2, :])
    return jnp.stack(cols, axis=3)


def im2col_3x3_s2_last2(x):
    *lead, H, W = x.shape
    xp = jnp.pad(x, [(0, 0)] * len(lead) + [(1, 1), (1, 1)])
    Ho, Wo = H // 2, W // 2
    cols = []
    for kh in range(3):
        for kw in range(3):
            cols.append(xp[..., kh:kh + 2 * Ho:2, kw:kw + 2 * Wo:2])
    return jnp.stack(cols, axis=-1)


def forward_ref(x_nchw, params, cfg):
    n, c_in, hh, ww = x_nchw.shape
    x = jnp.transpose(x_nchw, (0, 2, 3, 1))
    cur_c = params["stem_w"].shape[1]
    h = _conv1x1_ref(x.reshape(n * hh * ww, c_in), params["stem_w"], *params["stem_bn"])
    cur_h, cur_w = hh, ww
    for st in params["stages"]:
        h4d = h.reshape(n, cur_h, cur_w, cur_c)
        pats = im2col_3x3_s2_nhwc(h4d)
        cur_h, cur_w = cur_h // 2, cur_w // 2
        h = _dwconv_ref(pats.reshape(n * cur_h * cur_w, 9, cur_c), st["dw_w"], *st["dw_bn"])
        h = _conv1x1_ref(h, st["pw_w"], *st["pw_bn"])
        cur_c = st["pw_w"].shape[1]
    h = _se_ref(h.reshape(n, cur_h * cur_w, cur_c),
                params["se_w1"], params["se_b1"], params["se_w2"], params["se_b2"])
    j = params["head_w"].shape[1]
    h = _conv1x1_ref(h.reshape(n * cur_h * cur_w, cur_c),
                     params["head_w"], *params["head_bn"]).reshape(n, cur_h, cur_w, j)
    ph, pw = cfg["patch"]
    nh, nw = cur_h // ph, cur_w // pw
    num_patches = nh * nw
    xp = (h.reshape(n, nh, ph, nw, pw, j)
           .transpose(0, 1, 3, 5, 2, 4)
           .reshape(n, num_patches, j, ph, pw))
    pats = im2col_3x3_s2_last2(xp)
    ho2, wo2 = ph // 2, pw // 2
    pats = pats.transpose(0, 2, 3, 4, 5, 1).reshape(n * j, ho2 * wo2, 9, num_patches)
    out = _predictor_ref(pats, params["pred_w"], *params["pred_bn"])
    return out.reshape(n, j, num_patches)


# --------------------------------------------------------------------------- #
# Parameters (deterministic, synthetic; BatchNorm folded to scale/bias)
# --------------------------------------------------------------------------- #
def make_bn(key, c):
    k1, k2, k3, k4 = jax.random.split(key, 4)
    gamma = 1.0 + 0.1 * jax.random.normal(k1, (c,), jnp.float32)
    beta = 0.1 * jax.random.normal(k2, (c,), jnp.float32)
    mean = 0.1 * jax.random.normal(k3, (c,), jnp.float32)
    var = 1.0 + 0.1 * jax.random.uniform(k4, (c,), jnp.float32)
    scale = gamma / jnp.sqrt(var + EPS)
    bias = beta - scale * mean
    return scale, bias


def init_params(key, cfg):
    c_in = cfg["img_channels"]
    hidden = cfg["hidden"]
    j = cfg["num_joints"]
    p = (cfg["heatmap"][0] // cfg["patch"][0]) * (cfg["heatmap"][1] // cfg["patch"][1])
    keys = iter(jax.random.split(key, 8 + 4 * len(hidden)))

    params = {}
    params["stem_w"] = 0.1 * jax.random.normal(next(keys), (c_in, hidden[0]), jnp.float32)
    params["stem_bn"] = make_bn(next(keys), hidden[0])
    stages = []
    for i in range(len(hidden) - 1):
        ci, co = hidden[i], hidden[i + 1]
        stages.append(dict(
            dw_w=0.1 * jax.random.normal(next(keys), (9, ci), jnp.float32),
            dw_bn=make_bn(next(keys), ci),
            pw_w=0.1 * jax.random.normal(next(keys), (ci, co), jnp.float32),
            pw_bn=make_bn(next(keys), co),
        ))
    params["stages"] = stages
    c_last = hidden[-1]
    cs = c_last // 4
    params["se_w1"] = 0.1 * jax.random.normal(next(keys), (c_last, cs), jnp.float32)
    params["se_b1"] = 0.1 * jax.random.normal(next(keys), (cs,), jnp.float32)
    params["se_w2"] = 0.1 * jax.random.normal(next(keys), (cs, c_last), jnp.float32)
    params["se_b2"] = 0.1 * jax.random.normal(next(keys), (c_last,), jnp.float32)
    params["head_w"] = 0.1 * jax.random.normal(next(keys), (c_last, j), jnp.float32)
    params["head_bn"] = make_bn(next(keys), j)
    params["pred_w"] = 0.1 * jax.random.normal(next(keys), (9, p), jnp.float32)
    params["pred_bn"] = make_bn(next(keys), p)
    return params


# --------------------------------------------------------------------------- #
if __name__ == "__main__":
    cfg = dict(img_channels=4, hidden=[8, 16], num_joints=8,
               heatmap=(8, 8), patch=(4, 4))

    key = jax.random.PRNGKey(0)
    kx, kp = jax.random.split(key)
    params = init_params(kp, cfg)
    # PyTorch-style NCHW input
    x = jax.random.normal(kx, (2, cfg["img_channels"], 16, 16), jnp.float32)

    out = forward_pallas(x, params, cfg)
    out = jax.block_until_ready(out)

    ref = forward_ref(x, params, cfg)
    assert out.shape == (2, cfg["num_joints"], 4), out.shape
    np.testing.assert_allclose(np.asarray(out), np.asarray(ref), rtol=5e-2, atol=2e-3)

    print("KERNEL_OK")
</pallas_src>

<mosaic_0001>
module attributes {stable_mosaic.version = 11 : i64} {
  func.func @kernel(%arg0: i32, %arg1: memref<2x4x8x8x4xf32, #tpu.memory_space<vmem>>, %arg2: memref<80x128xf32, #tpu.memory_space<vmem>>, %arg3: memref<10x8x8x8xf32, #tpu.memory_space<vmem>>, %arg4: memref<2x32xf32, #tpu.memory_space<vmem>>) attributes {dimension_semantics = [#tpu.dimension_semantics<parallel>], iteration_bounds = array<i64: 1>, scalar_prefetch = 0 : i64, scratch_operands = 0 : i64, tpu.core_type = #tpu.core_type<tc>, window_params = [{transform_indices = @transform_0, window_bounds = array<i64: 2, 4, 8, 8, 4>}, {pipeline_mode = #tpu.pipeline_mode<synchronous>, transform_indices = @transform_1, window_bounds = array<i64: 80, 128>}, {pipeline_mode = #tpu.pipeline_mode<synchronous>, transform_indices = @transform_2, window_bounds = array<i64: 10, 8, 8, 8>}, {transform_indices = @transform_3, window_bounds = array<i64: 2, 32>}]} {
    %c0 = arith.constant 0 : index
    %c0_0 = arith.constant 0 : index
    %c0_1 = arith.constant 0 : index
    %c0_2 = arith.constant 0 : index
    %c0_3 = arith.constant 0 : index
    %0 = vector.load %arg1[%c0, %c0_0, %c0_1, %c0_2, %c0_3] : memref<2x4x8x8x4xf32, #tpu.memory_space<vmem>>, vector<2x4x8x8x4xf32>
    %1 = vector.shape_cast %0 : vector<2x4x8x8x4xf32> to vector<512x4xf32>
    %c0_4 = arith.constant 0 : index
    %c0_5 = arith.constant 0 : index
    %2 = vector.load %arg2[%c0_4, %c0_5] : memref<80x128xf32, #tpu.memory_space<vmem>>, vector<4x8xf32>
    %cst = arith.constant dense<0.000000e+00> : vector<512x8xf32>
    %3 = tpu.matmul %1, %2, %cst {dimension_numbers = #tpu.dot_dimension_numbers<[1], [0], [0], [1], [0, 0, 1, 1], [], []>} : vector<512x4xf32>, vector<4x8xf32>, vector<512x8xf32> -> vector<512x8xf32>
    %c72 = arith.constant 72 : index
    %c0_6 = arith.constant 0 : index
    %4 = vector.load %arg2[%c72, %c0_6] : memref<80x128xf32, #tpu.memory_space<vmem>>, vector<1x8xf32>
    %5 = vector.broadcast %4 : vector<1x8xf32> to vector<512x8xf32>
    %6 = arith.addf %3, %5 : vector<512x8xf32>
    %cst_7 = arith.constant 0.000000e+00 : f32
    %7 = vector.broadcast %cst_7 : f32 to vector<512x8xf32>
    %8 = arith.maximumf %6, %7 : vector<512x8xf32>
    %9 = vector.shape_cast %8 : vector<512x8xf32> to vector<2x4x8x8x8xf32>
    %10 = vector.extract_strided_slice %9 {offsets = [0, 0, 0, 0, 0], sizes = [2, 1, 8, 8, 8], strides = [1, 1, 1, 1, 1]} : vector<2x4x8x8x8xf32> to vector<2x1x8x8x8xf32>
    %11 = vector.shape_cast %10 : vector<2x1x8x8x8xf32> to vector<2x8x8x8xf32>
    %12 = vector.extract_strided_slice %9 {offsets = [0, 1, 0, 0, 0], sizes = [2, 1, 8, 8, 8], strides = [1, 1, 1, 1, 1]} : vector<2x4x8x8x8xf32> to vector<2x1x8x8x8xf32>
    %13 = vector.shape_cast %12 : vector<2x1x8x8x8xf32> to vector<2x8x8x8xf32>
    %14 = vector.extract_strided_slice %9 {offsets = [0, 2, 0, 0, 0], sizes = [2, 1, 8, 8, 8], strides = [1, 1, 1, 1, 1]} : vector<2x4x8x8x8xf32> to vector<2x1x8x8x8xf32>
    %15 = vector.shape_cast %14 : vector<2x1x8x8x8xf32> to vector<2x8x8x8xf32>
    %16 = vector.extract_strided_slice %9 {offsets = [0, 3, 0, 0, 0], sizes = [2, 1, 8, 8, 8], strides = [1, 1, 1, 1, 1]} : vector<2x4x8x8x8xf32> to vector<2x1x8x8x8xf32>
    %17 = vector.shape_cast %16 : vector<2x1x8x8x8xf32> to vector<2x8x8x8xf32>
    %c8 = arith.constant 8 : index
    %c0_8 = arith.constant 0 : index
    %18 = vector.load %arg2[%c8, %c0_8] : memref<80x128xf32, #tpu.memory_space<vmem>>, vector<9x8xf32>
    %19 = vector.extract_strided_slice %18 {offsets = [4, 0], sizes = [1, 8], strides = [1, 1]} : vector<9x8xf32> to vector<1x8xf32>
    %20 = vector.shape_cast %19 : vector<1x8xf32> to vector<1x1x1x8xf32>
    %21 = vector.broadcast %20 : vector<1x1x1x8xf32> to vector<2x8x8x8xf32>
    %22 = arith.mulf %11, %21 : vector<2x8x8x8xf32>
    %23 = vector.extract_strided_slice %18 {offsets = [5, 0], sizes = [1, 8], strides = [1, 1]} : vector<9x8xf32> to vector<1x8xf32>
    %24 = vector.shape_cast %23 : vector<1x8xf32> to vector<1x1x1x8xf32>
    %25 = vector.broadcast %24 : vector<1x1x1x8xf32> to vector<2x8x8x8xf32>
    %26 = arith.mulf %13, %25 : vector<2x8x8x8xf32>
    %27 = arith.addf %22, %26 : vector<2x8x8x8xf32>
    %cst_9 = arith.constant 0.000000e+00 : f32
    %28 = vector.broadcast %cst_9 : f32 to vector<2x8x1x8xf32>
    %29 = vector.extract_strided_slice %13 {offsets = [0, 0, 0, 0], sizes = [2, 8, 7, 8], strides = [1, 1, 1, 1]} : vector<2x8x8x8xf32> to vector<2x8x7x8xf32>
    %30 = tpu.concatenate %28, %29 in 2 : vector<2x8x1x8xf32>, vector<2x8x7x8xf32> -> vector<2x8x8x8xf32>
    %31 = vector.extract_strided_slice %18 {offsets = [3, 0], sizes = [1, 8], strides = [1, 1]} : vector<9x8xf32> to vector<1x8xf32>
    %32 = vector.shape_cast %31 : vector<1x8xf32> to vector<1x1x1x8xf32>
    %33 = vector.broadcast %32 : vector<1x1x1x8xf32> to vector<2x8x8x8xf32>
    %34 = arith.mulf %30, %33 : vector<2x8x8x8xf32>
    %35 = arith.addf %27, %34 : vector<2x8x8x8xf32>
    %36 = vector.extract_strided_slice %18 {offsets = [7, 0], sizes = [1, 8], strides = [1, 1]} : vector<9x8xf32> to vector<1x8xf32>
    %37 = vector.shape_cast %36 : vector<1x8xf32> to vector<1x1x1x8xf32>
    %38 = vector.broadcast %37 : vector<1x1x1x8xf32> to vector<2x8x8x8xf32>
    %39 = arith.mulf %15, %38 : vector<2x8x8x8xf32>
    %40 = arith.addf %35, %39 : vector<2x8x8x8xf32>
    %cst_10 = arith.constant 0.000000e+00 : f32
    %41 = vector.broadcast %cst_10 : f32 to vector<2x1x8x8xf32>
    %42 = vector.extract_strided_slice %15 {offsets = [0, 0, 0, 0], sizes = [2, 7, 8, 8], strides = [1, 1, 1, 1]} : vector<2x8x8x8xf32> to vector<2x7x8x8xf32>
    %43 = tpu.concatenate %41, %42 in 1 : vector<2x1x8x8xf32>, vector<2x7x8x8xf32> -> vector<2x8x8x8xf32>
    %44 = vector.extract_strided_slice %18 {offsets = [1, 0], sizes = [1, 8], strides = [1, 1]} : vector<9x8xf32> to vector<1x8xf32>
    %45 = vector.shape_cast %44 : vector<1x8xf32> to vector<1x1x1x8xf32>
    %46 = vector.broadcast %45 : vector<1x1x1x8xf32> to vector<2x8x8x8xf32>
    %47 = arith.mulf %43, %46 : vector<2x8x8x8xf32>
    %48 = arith.addf %40, %47 : vector<2x8x8x8xf32>
    %49 = vector.extract_strided_slice %18 {offsets = [8, 0], sizes = [1, 8], strides = [1, 1]} : vector<9x8xf32> to vector<1x8xf32>
    %50 = vector.shape_cast %49 : vector<1x8xf32> to vector<1x1x1x8xf32>
    %51 = vector.broadcast %50 : vector<1x1x1x8xf32> to vector<2x8x8x8xf32>
    %52 = arith.mulf %17, %51 : vector<2x8x8x8xf32>
    %53 = arith.addf %48, %52 : vector<2x8x8x8xf32>
    %cst_11 = arith.constant 0.000000e+00 : f32
    %54 = vector.broadcast %cst_11 : f32 to vector<2x8x1x8xf32>
    %55 = vector.extract_strided_slice %17 {offsets = [0, 0, 0, 0], sizes = [2, 8, 7, 8], strides = [1, 1, 1, 1]} : vector<2x8x8x8xf32> to vector<2x8x7x8xf32>
    %56 = tpu.concatenate %54, %55 in 2 : vector<2x8x1x8xf32>, vector<2x8x7x8xf32> -> vector<2x8x8x8xf32>
    %57 = vector.extract_strided_slice %18 {offsets = [6, 0], sizes = [1, 8], strides = [1, 1]} : vector<9x8xf32> to vector<1x8xf32>
    %58 = vector.shape_cast %57 : vector<1x8xf32> to vector<1x1x1x8xf32>
    %59 = vector.broadcast %58 : vector<1x1x1x8xf32> to vector<2x8x8x8xf32>
    %60 = arith.mulf %56, %59 : vector<2x8x8x8xf32>
    %61 = arith.addf %53, %60 : vector<2x8x8x8xf32>
    %cst_12 = arith.constant 0.000000e+00 : f32
    %62 = vector.broadcast %cst_12 : f32 to vector<2x1x8x8xf32>
    %63 = vector.extract_strided_slice %17 {offsets = [0, 0, 0, 0], sizes = [2, 7, 8, 8], strides = [1, 1, 1, 1]} : vector<2x8x8x8xf32> to vector<2x7x8x8xf32>
    %64 = tpu.concatenate %62, %63 in 1 : vector<2x1x8x8xf32>, vector<2x7x8x8xf32> -> vector<2x8x8x8xf32>
    %65 = vector.extract_strided_slice %18 {offsets = [2, 0], sizes = [1, 8], strides = [1, 1]} : vector<9x8xf32> to vector<1x8xf32>
    %66 = vector.shape_cast %65 : vector<1x8xf32> to vector<1x1x1x8xf32>
    %67 = vector.broadcast %66 : vector<1x1x1x8xf32> to vector<2x8x8x8xf32>
    %68 = arith.mulf %64, %67 : vector<2x8x8x8xf32>
    %69 = arith.addf %61, %68 : vector<2x8x8x8xf32>
    %cst_13 = arith.constant 0.000000e+00 : f32
    %70 = vector.broadcast %cst_13 : f32 to vector<2x8x1x8xf32>
    %71 = vector.extract_strided_slice %17 {offsets = [0, 0, 0, 0], sizes = [2, 8, 7, 8], strides = [1, 1, 1, 1]} : vector<2x8x8x8xf32> to vector<2x8x7x8xf32>
    %72 = tpu.concatenate %70, %71 in 2 : vector<2x8x1x8xf32>, vector<2x8x7x8xf32> -> vector<2x8x8x8xf32>
    %cst_14 = arith.constant 0.000000e+00 : f32
    %73 = vector.broadcast %cst_14 : f32 to vector<2x1x8x8xf32>
    %74 = vector.extract_strided_slice %72 {offsets = [0, 0, 0, 0], sizes = [2, 7, 8, 8], strides = [1, 1, 1, 1]} : vector<2x8x8x8xf32> to vector<2x7x8x8xf32>
    %75 = tpu.concatenate %73, %74 in 1 : vector<2x1x8x8xf32>, vector<2x7x8x8xf32> -> vector<2x8x8x8xf32>
    %76 = vector.extract_strided_slice %18 {offsets = [0, 0], sizes = [1, 8], strides = [1, 1]} : vector<9x8xf32> to vector<1x8xf32>
    %77 = vector.shape_cast %76 : vector<1x8xf32> to vector<1x1x1x8xf32>
    %78 = vector.broadcast %77 : vector<1x1x1x8xf32> to vector<2x8x8x8xf32>
    %79 = arith.mulf %75, %78 : vector<2x8x8x8xf32>
    %80 = arith.addf %69, %79 : vector<2x8x8x8xf32>
    %c73 = arith.constant 73 : index
    %c0_15 = arith.constant 0 : index
    %81 = vector.load %arg2[%c73, %c0_15] : memref<80x128xf32, #tpu.memory_space<vmem>>, vector<1x8xf32>
    %82 = vector.shape_cast %81 : vector<1x8xf32> to vector<1x1x1x8xf32>
    %83 = vector.broadcast %82 : vector<1x1x1x8xf32> to vector<2x8x8x8xf32>
    %84 = arith.addf %80, %83 : vector<2x8x8x8xf32>
    %cst_16 = arith.constant 0.000000e+00 : f32
    %85 = vector.broadcast %cst_16 : f32 to vector<2x8x8x8xf32>
    %86 = arith.maximumf %84, %85 : vector<2x8x8x8xf32>
    %87 = vector.shape_cast %86 : vector<2x8x8x8xf32> to vector<128x8xf32>
    %c24 = arith.constant 24 : index
    %c0_17 = arith.constant 0 : index
    %88 = vector.load %arg2[%c24, %c0_17] : memref<80x128xf32, #tpu.memory_space<vmem>>, vector<8x16xf32>
    %cst_18 = arith.constant dense<0.000000e+00> : vector<128x16xf32>
    %89 = tpu.matmul %87, %88, %cst_18 {dimension_numbers = #tpu.dot_dimension_numbers<[1], [0], [0], [1], [0, 0, 1, 1], [], []>} : vector<128x8xf32>, vector<8x16xf32>, vector<128x16xf32> -> vector<128x16xf32>
    %c74 = arith.constant 74 : index
    %c0_19 = arith.constant 0 : index
    %90 = vector.load %arg2[%c74, %c0_19] : memref<80x128xf32, #tpu.memory_space<vmem>>, vector<1x16xf32>
    %91 = vector.broadcast %90 : vector<1x16xf32> to vector<128x16xf32>
    %92 = arith.addf %89, %91 : vector<128x16xf32>
    %cst_20 = arith.constant 0.000000e+00 : f32
    %93 = vector.broadcast %cst_20 : f32 to vector<128x16xf32>
    %94 = arith.maximumf %92, %93 : vector<128x16xf32>
    %95 = vector.shape_cast %94 : vector<128x16xf32> to vector<2x64x16xf32>
    %cst_21 = arith.constant dense<0.000000e+00> : vector<2x16xf32>
    %96 = vector.multi_reduction <add>, %95, %cst_21 [1] : vector<2x64x16xf32> to vector<2x16xf32>
    %cst_22 = arith.constant 6.400000e+01 : f32
    %97 = vector.broadcast %cst_22 : f32 to vector<2x16xf32>
    %98 = arith.divf %96, %97 : vector<2x16xf32>
    %c32 = arith.constant 32 : index
    %c0_23 = arith.constant 0 : index
    %99 = vector.load %arg2[%c32, %c0_23] : memref<80x128xf32, #tpu.memory_space<vmem>>, vector<16x4xf32>
    %cst_24 = arith.constant dense<0.000000e+00> : vector<2x4xf32>
    %100 = tpu.matmul %98, %99, %cst_24 {dimension_numbers = #tpu.dot_dimension_numbers<[1], [0], [0], [1], [0, 0, 1, 1], [], []>} : vector<2x16xf32>, vector<16x4xf32>, vector<2x4xf32> -> vector<2x4xf32>
    %c75 = arith.constant 75 : index
    %c0_25 = arith.constant 0 : index
    %101 = vector.load %arg2[%c75, %c0_25] : memref<80x128xf32, #tpu.memory_space<vmem>>, vector<1x4xf32>
    %102 = vector.broadcast %101 : vector<1x4xf32> to vector<2x4xf32>
    %103 = arith.addf %100, %102 : vector<2x4xf32>
    %cst_26 = arith.constant 0.000000e+00 : f32
    %104 = vector.broadcast %cst_26 : f32 to vector<2x4xf32>
    %105 = arith.maximumf %103, %104 : vector<2x4xf32>
    %c48 = arith.constant 48 : index
    %c0_27 = arith.constant 0 : index
    %106 = vector.load %arg2[%c48, %c0_27] : memref<80x128xf32, #tpu.memory_space<vmem>>, vector<4x16xf32>
    %cst_28 = arith.constant dense<0.000000e+00> : vector<2x16xf32>
    %107 = tpu.matmul %105, %106, %cst_28 {dimension_numbers = #tpu.dot_dimension_numbers<[1], [0], [0], [1], [0, 0, 1, 1], [], []>} : vector<2x4xf32>, vector<4x16xf32>, vector<2x16xf32> -> vector<2x16xf32>
    %c76 = arith.constant 76 : index
    %c0_29 = arith.constant 0 : index
    %108 = vector.load %arg2[%c76, %c0_29] : memref<80x128xf32, #tpu.memory_space<vmem>>, vector<1x16xf32>
    %109 = vector.broadcast %108 : vector<1x16xf32> to vector<2x16xf32>
    %110 = arith.addf %107, %109 : vector<2x16xf32>
    %cst_30 = arith.constant 0.000000e+00 : f32
    %111 = vector.broadcast %cst_30 : f32 to vector<2x16xf32>
    %112 = arith.subf %111, %110 : vector<2x16xf32>
    %113 = math.exp %112 : vector<2x16xf32>
    %cst_31 = arith.constant 1.000000e+00 : f32
    %114 = vector.broadcast %cst_31 : f32 to vector<2x16xf32>
    %115 = arith.addf %114, %113 : vector<2x16xf32>
    %cst_32 = arith.constant 1.000000e+00 : f32
    %116 = vector.broadcast %cst_32 : f32 to vector<2x16xf32>
    %117 = arith.divf %116, %115 : vector<2x16xf32>
    %118 = vector.shape_cast %117 : vector<2x16xf32> to vector<2x1x16xf32>
    %119 = vector.broadcast %118 : vector<2x1x16xf32> to vector<2x64x16xf32>
    %120 = arith.mulf %95, %119 : vector<2x64x16xf32>
    %121 = vector.shape_cast %120 : vector<2x64x16xf32> to vector<128x16xf32>
    %c56 = arith.constant 56 : index
    %c0_33 = arith.constant 0 : index
    %122 = vector.load %arg2[%c56, %c0_33] : memref<80x128xf32, #tpu.memory_space<vmem>>, vector<16x8xf32>
    %cst_34 = arith.constant dense<0.000000e+00> : vector<128x8xf32>
    %123 = tpu.matmul %121, %122, %cst_34 {dimension_numbers = #tpu.dot_dimension_numbers<[1], [0], [0], [1], [0, 0, 1, 1], [], []>} : vector<128x16xf32>, vector<16x8xf32>, vector<128x8xf32> -> vector<128x8xf32>
    %c77 = arith.constant 77 : index
    %c0_35 = arith.constant 0 : index
    %124 = vector.load %arg2[%c77, %c0_35] : memref<80x128xf32, #tpu.memory_space<vmem>>, vector<1x8xf32>
    %125 = vector.broadcast %124 : vector<1x8xf32> to vector<128x8xf32>
    %126 = arith.addf %123, %125 : vector<128x8xf32>
    %cst_36 = arith.constant 0.000000e+00 : f32
    %127 = vector.broadcast %cst_36 : f32 to vector<128x8xf32>
    %128 = arith.maximumf %126, %127 : vector<128x8xf32>
    %129 = vector.shape_cast %128 : vector<128x8xf32> to vector<2x8x8x8xf32>
    %cst_37 = arith.constant 0.000000e+00 : f32
    %130 = vector.broadcast %cst_37 : f32 to vector<2x8x1x8xf32>
    %131 = vector.extract_strided_slice %129 {offsets = [0, 0, 0, 0], sizes = [2, 8, 7, 8], strides = [1, 1, 1, 1]} : vector<2x8x8x8xf32> to vector<2x8x7x8xf32>
    %132 = tpu.concatenate %130, %131 in 2 : vector<2x8x1x8xf32>, vector<2x8x7x8xf32> -> vector<2x8x8x8xf32>
    %cst_38 = arith.constant 0.000000e+00 : f32
    %133 = vector.broadcast %cst_38 : f32 to vector<2x1x8x8xf32>
    %134 = vector.extract_strided_slice %132 {offsets = [0, 0, 0, 0], sizes = [2, 7, 8, 8], strides = [1, 1, 1, 1]} : vector<2x8x8x8xf32> to vector<2x7x8x8xf32>
    %135 = tpu.concatenate %133, %134 in 1 : vector<2x1x8x8xf32>, vector<2x7x8x8xf32> -> vector<2x8x8x8xf32>
    %cst_39 = arith.constant 0.000000e+00 : f32
    %136 = vector.broadcast %cst_39 : f32 to vector<2x1x8x8xf32>
    %137 = vector.extract_strided_slice %129 {offsets = [0, 0, 0, 0], sizes = [2, 7, 8, 8], strides = [1, 1, 1, 1]} : vector<2x8x8x8xf32> to vector<2x7x8x8xf32>
    %138 = tpu.concatenate %136, %137 in 1 : vector<2x1x8x8xf32>, vector<2x7x8x8xf32> -> vector<2x8x8x8xf32>
    %139 = vector.extract_strided_slice %129 {offsets = [0, 0, 1, 0], sizes = [2, 8, 7, 8], strides = [1, 1, 1, 1]} : vector<2x8x8x8xf32> to vector<2x8x7x8xf32>
    %cst_40 = arith.constant 0.000000e+00 : f32
    %140 = vector.broadcast %cst_40 : f32 to vector<2x8x1x8xf32>
    %141 = tpu.concatenate %139, %140 in 2 : vector<2x8x7x8xf32>, vector<2x8x1x8xf32> -> vector<2x8x8x8xf32>
    %cst_41 = arith.constant 0.000000e+00 : f32
    %142 = vector.broadcast %cst_41 : f32 to vector<2x1x8x8xf32>
    %143 = vector.extract_strided_slice %141 {offsets = [0, 0, 0, 0], sizes = [2, 7, 8, 8], strides = [1, 1, 1, 1]} : vector<2x8x8x8xf32> to vector<2x7x8x8xf32>
    %144 = tpu.concatenate %142, %143 in 1 : vector<2x1x8x8xf32>, vector<2x7x8x8xf32> -> vector<2x8x8x8xf32>
    %cst_42 = arith.constant 0.000000e+00 : f32
    %145 = vector.broadcast %cst_42 : f32 to vector<2x8x1x8xf32>
    %146 = vector.extract_strided_slice %129 {offsets = [0, 0, 0, 0], sizes = [2, 8, 7, 8], strides = [1, 1, 1, 1]} : vector<2x8x8x8xf32> to vector<2x8x7x8xf32>
    %147 = tpu.concatenate %145, %146 in 2 : vector<2x8x1x8xf32>, vector<2x8x7x8xf32> -> vector<2x8x8x8xf32>
    %148 = vector.extract_strided_slice %129 {offsets = [0, 0, 1, 0], sizes = [2, 8, 7, 8], strides = [1, 1, 1, 1]} : vector<2x8x8x8xf32> to vector<2x8x7x8xf32>
    %cst_43 = arith.constant 0.000000e+00 : f32
    %149 = vector.broadcast %cst_43 : f32 to vector<2x8x1x8xf32>
    %150 = tpu.concatenate %148, %149 in 2 : vector<2x8x7x8xf32>, vector<2x8x1x8xf32> -> vector<2x8x8x8xf32>
    %cst_44 = arith.constant 0.000000e+00 : f32
    %151 = vector.broadcast %cst_44 : f32 to vector<2x8x1x8xf32>
    %152 = vector.extract_strided_slice %129 {offsets = [0, 0, 0, 0], sizes = [2, 8, 7, 8], strides = [1, 1, 1, 1]} : vector<2x8x8x8xf32> to vector<2x8x7x8xf32>
    %153 = tpu.concatenate %151, %152 in 2 : vector<2x8x1x8xf32>, vector<2x8x7x8xf32> -> vector<2x8x8x8xf32>
    %154 = vector.extract_strided_slice %153 {offsets = [0, 1, 0, 0], sizes = [2, 7, 8, 8], strides = [1, 1, 1, 1]} : vector<2x8x8x8xf32> to vector<2x7x8x8xf32>
    %cst_45 = arith.constant 0.000000e+00 : f32
    %155 = vector.broadcast %cst_45 : f32 to vector<2x1x8x8xf32>
    %156 = tpu.concatenate %154, %155 in 1 : vector<2x7x8x8xf32>, vector<2x1x8x8xf32> -> vector<2x8x8x8xf32>
    %157 = vector.extract_strided_slice %129 {offsets = [0, 1, 0, 0], sizes = [2, 7, 8, 8], strides = [1, 1, 1, 1]} : vector<2x8x8x8xf32> to vector<2x7x8x8xf32>
    %cst_46 = arith.constant 0.000000e+00 : f32
    %158 = vector.broadcast %cst_46 : f32 to vector<2x1x8x8xf32>
    %159 = tpu.concatenate %157, %158 in 1 : vector<2x7x8x8xf32>, vector<2x1x8x8xf32> -> vector<2x8x8x8xf32>
    %160 = vector.extract_strided_slice %129 {offsets = [0, 0, 1, 0], sizes = [2, 8, 7, 8], strides = [1, 1, 1, 1]} : vector<2x8x8x8xf32> to vector<2x8x7x8xf32>
    %cst_47 = arith.constant 0.000000e+00 : f32
    %161 = vector.broadcast %cst_47 : f32 to vector<2x8x1x8xf32>
    %162 = tpu.concatenate %160, %161 in 2 : vector<2x8x7x8xf32>, vector<2x8x1x8xf32> -> vector<2x8x8x8xf32>
    %163 = vector.extract_strided_slice %162 {offsets = [0, 1, 0, 0], sizes = [2, 7, 8, 8], strides = [1, 1, 1, 1]} : vector<2x8x8x8xf32> to vector<2x7x8x8xf32>
    %cst_48 = arith.constant 0.000000e+00 : f32
    %164 = vector.broadcast %cst_48 : f32 to vector<2x1x8x8xf32>
    %165 = tpu.concatenate %163, %164 in 1 : vector<2x7x8x8xf32>, vector<2x1x8x8xf32> -> vector<2x8x8x8xf32>
    %c0_49 = arith.constant 0 : index
    %c0_50 = arith.constant 0 : index
    %c0_51 = arith.constant 0 : index
    %c0_52 = arith.constant 0 : index
    %166 = vector.load %arg3[%c0_49, %c0_50, %c0_51, %c0_52] : memref<10x8x8x8xf32, #tpu.memory_space<vmem>>, vector<1x8x8x8xf32>
    %167 = vector.shape_cast %166 : vector<1x8x8x8xf32> to vector<8x8x8xf32>
    %168 = vector.shape_cast %167 : vector<8x8x8xf32> to vector<1x8x8x8xf32>
    %169 = vector.broadcast %168 : vector<1x8x8x8xf32> to vector<2x8x8x8xf32>
    %170 = arith.mulf %135, %169 : vector<2x8x8x8xf32>
    %c1 = arith.constant 1 : index
    %c0_53 = arith.constant 0 : index
    %c0_54 = arith.constant 0 : index
    %c0_55 = arith.constant 0 : index
    %171 = vector.load %arg3[%c1, %c0_53, %c0_54, %c0_55] : memref<10x8x8x8xf32, #tpu.memory_space<vmem>>, vector<1x8x8x8xf32>
    %172 = vector.shape_cast %171 : vector<1x8x8x8xf32> to vector<8x8x8xf32>
    %173 = vector.shape_cast %172 : vector<8x8x8xf32> to vector<1x8x8x8xf32>
    %174 = vector.broadcast %173 : vector<1x8x8x8xf32> to vector<2x8x8x8xf32>
    %175 = arith.mulf %138, %174 : vector<2x8x8x8xf32>
    %176 = arith.addf %170, %175 : vector<2x8x8x8xf32>
    %c2 = arith.constant 2 : index
    %c0_56 = arith.constant 0 : index
    %c0_57 = arith.constant 0 : index
    %c0_58 = arith.constant 0 : index
    %177 = vector.load %arg3[%c2, %c0_56, %c0_57, %c0_58] : memref<10x8x8x8xf32, #tpu.memory_space<vmem>>, vector<1x8x8x8xf32>
    %178 = vector.shape_cast %177 : vector<1x8x8x8xf32> to vector<8x8x8xf32>
    %179 = vector.shape_cast %178 : vector<8x8x8xf32> to vector<1x8x8x8xf32>
    %180 = vector.broadcast %179 : vector<1x8x8x8xf32> to vector<2x8x8x8xf32>
    %181 = arith.mulf %144, %180 : vector<2x8x8x8xf32>
    %182 = arith.addf %176, %181 : vector<2x8x8x8xf32>
    %c3 = arith.constant 3 : index
    %c0_59 = arith.constant 0 : index
    %c0_60 = arith.constant 0 : index
    %c0_61 = arith.constant 0 : index
    %183 = vector.load %arg3[%c3, %c0_59, %c0_60, %c0_61] : memref<10x8x8x8xf32, #tpu.memory_space<vmem>>, vector<1x8x8x8xf32>
    %184 = vector.shape_cast %183 : vector<1x8x8x8xf32> to vector<8x8x8xf32>
    %185 = vector.shape_cast %184 : vector<8x8x8xf32> to vector<1x8x8x8xf32>
    %186 = vector.broadcast %185 : vector<1x8x8x8xf32> to vector<2x8x8x8xf32>
    %187 = arith.mulf %147, %186 : vector<2x8x8x8xf32>
    %188 = arith.addf %182, %187 : vector<2x8x8x8xf32>
    %c4 = arith.constant 4 : index
    %c0_62 = arith.constant 0 : index
    %c0_63 = arith.constant 0 : index
    %c0_64 = arith.constant 0 : index
    %189 = vector.load %arg3[%c4, %c0_62, %c0_63, %c0_64] : memref<10x8x8x8xf32, #tpu.memory_space<vmem>>, vector<1x8x8x8xf32>
    %190 = vector.shape_cast %189 : vector<1x8x8x8xf32> to vector<8x8x8xf32>
    %191 = vector.shape_cast %190 : vector<8x8x8xf32> to vector<1x8x8x8xf32>
    %192 = vector.broadcast %191 : vector<1x8x8x8xf32> to vector<2x8x8x8xf32>
    %193 = arith.mulf %129, %192 : vector<2x8x8x8xf32>
    %194 = arith.addf %188, %193 : vector<2x8x8x8xf32>
    %c5 = arith.constant 5 : index
    %c0_65 = arith.constant 0 : index
    %c0_66 = arith.constant 0 : index
    %c0_67 = arith.constant 0 : index
    %195 = vector.load %arg3[%c5, %c0_65, %c0_66, %c0_67] : memref<10x8x8x8xf32, #tpu.memory_space<vmem>>, vector<1x8x8x8xf32>
    %196 = vector.shape_cast %195 : vector<1x8x8x8xf32> to vector<8x8x8xf32>
    %197 = vector.shape_cast %196 : vector<8x8x8xf32> to vector<1x8x8x8xf32>
    %198 = vector.broadcast %197 : vector<1x8x8x8xf32> to vector<2x8x8x8xf32>
    %199 = arith.mulf %150, %198 : vector<2x8x8x8xf32>
    %200 = arith.addf %194, %199 : vector<2x8x8x8xf32>
    %c6 = arith.constant 6 : index
    %c0_68 = arith.constant 0 : index
    %c0_69 = arith.constant 0 : index
    %c0_70 = arith.constant 0 : index
    %201 = vector.load %arg3[%c6, %c0_68, %c0_69, %c0_70] : memref<10x8x8x8xf32, #tpu.memory_space<vmem>>, vector<1x8x8x8xf32>
    %202 = vector.shape_cast %201 : vector<1x8x8x8xf32> to vector<8x8x8xf32>
    %203 = vector.shape_cast %202 : vector<8x8x8xf32> to vector<1x8x8x8xf32>
    %204 = vector.broadcast %203 : vector<1x8x8x8xf32> to vector<2x8x8x8xf32>
    %205 = arith.mulf %156, %204 : vector<2x8x8x8xf32>
    %206 = arith.addf %200, %205 : vector<2x8x8x8xf32>
    %c7 = arith.constant 7 : index
    %c0_71 = arith.constant 0 : index
    %c0_72 = arith.constant 0 : index
    %c0_73 = arith.constant 0 : index
    %207 = vector.load %arg3[%c7, %c0_71, %c0_72, %c0_73] : memref<10x8x8x8xf32, #tpu.memory_space<vmem>>, vector<1x8x8x8xf32>
    %208 = vector.shape_cast %207 : vector<1x8x8x8xf32> to vector<8x8x8xf32>
    %209 = vector.shape_cast %208 : vector<8x8x8xf32> to vector<1x8x8x8xf32>
    %210 = vector.broadcast %209 : vector<1x8x8x8xf32> to vector<2x8x8x8xf32>
    %211 = arith.mulf %159, %210 : vector<2x8x8x8xf32>
    %212 = arith.addf %206, %211 : vector<2x8x8x8xf32>
    %c8_74 = arith.constant 8 : index
    %c0_75 = arith.constant 0 : index
    %c0_76 = arith.constant 0 : index
    %c0_77 = arith.constant 0 : index
    %213 = vector.load %arg3[%c8_74, %c0_75, %c0_76, %c0_77] : memref<10x8x8x8xf32, #tpu.memory_space<vmem>>, vector<1x8x8x8xf32>
    %214 = vector.shape_cast %213 : vector<1x8x8x8xf32> to vector<8x8x8xf32>
    %215 = vector.shape_cast %214 : vector<8x8x8xf32> to vector<1x8x8x8xf32>
    %216 = vector.broadcast %215 : vector<1x8x8x8xf32> to vector<2x8x8x8xf32>
    %217 = arith.mulf %165, %216 : vector<2x8x8x8xf32>
    %218 = arith.addf %212, %217 : vector<2x8x8x8xf32>
    %c9 = arith.constant 9 : index
    %c0_78 = arith.constant 0 : index
    %c0_79 = arith.constant 0 : index
    %c0_80 = arith.constant 0 : index
    %219 = vector.load %arg3[%c9, %c0_78, %c0_79, %c0_80] : memref<10x8x8x8xf32, #tpu.memory_space<vmem>>, vector<1x8x8x8xf32>
    %220 = vector.shape_cast %219 : vector<1x8x8x8xf32> to vector<8x8x8xf32>
    %221 = vector.shape_cast %220 : vector<8x8x8xf32> to vector<1x8x8x8xf32>
    %222 = vector.broadcast %221 : vector<1x8x8x8xf32> to vector<2x8x8x8xf32>
    %223 = arith.addf %218, %222 : vector<2x8x8x8xf32>
    %cst_81 = arith.constant 0.000000e+00 : f32
    %224 = vector.broadcast %cst_81 : f32 to vector<2x8x8x8xf32>
    %225 = arith.maximumf %223, %224 : vector<2x8x8x8xf32>
    %226 = vector.extract_strided_slice %225 {offsets = [0, 0, 0, 0], sizes = [2, 4, 4, 8], strides = [1, 1, 1, 1]} : vector<2x8x8x8xf32> to vector<2x4x4x8xf32>
    %cst_82 = arith.constant dense<0.000000e+00> : vector<2x8xf32>
    %227 = vector.multi_reduction <add>, %226, %cst_82 [1, 2] : vector<2x4x4x8xf32> to vector<2x8xf32>
    %228 = vector.extract_strided_slice %225 {offsets = [0, 0, 4, 0], sizes = [2, 4, 4, 8], strides = [1, 1, 1, 1]} : vector<2x8x8x8xf32> to vector<2x4x4x8xf32>
    %cst_83 = arith.constant dense<0.000000e+00> : vector<2x8xf32>
    %229 = vector.multi_reduction <add>, %228, %cst_83 [1, 2] : vector<2x4x4x8xf32> to vector<2x8xf32>
    %230 = vector.extract_strided_slice %225 {offsets = [0, 4, 0, 0], sizes = [2, 4, 4, 8], strides = [1, 1, 1, 1]} : vector<2x8x8x8xf32> to vector<2x4x4x8xf32>
    %cst_84 = arith.constant dense<0.000000e+00> : vector<2x8xf32>
    %231 = vector.multi_reduction <add>, %230, %cst_84 [1, 2] : vector<2x4x4x8xf32> to vector<2x8xf32>
    %232 = vector.extract_strided_slice %225 {offsets = [0, 4, 4, 0], sizes = [2, 4, 4, 8], strides = [1, 1, 1, 1]} : vector<2x8x8x8xf32> to vector<2x4x4x8xf32>
    %cst_85 = arith.constant dense<0.000000e+00> : vector<2x8xf32>
    %233 = vector.multi_reduction <add>, %232, %cst_85 [1, 2] : vector<2x4x4x8xf32> to vector<2x8xf32>
    %234 = tpu.concatenate %227, %229, %231, %233 in 1 : vector<2x8xf32>, vector<2x8xf32>, vector<2x8xf32>, vector<2x8xf32> -> vector<2x32xf32>
    %c0_86 = arith.constant 0 : index
    %c0_87 = arith.constant 0 : index
    %235 = vector.load %arg4[%c0_86, %c0_87] : memref<2x32xf32, #tpu.memory_space<vmem>>, vector<2x32xf32>
    tpu.vector_store %arg4[%c0_86, %c0_87], %234 {strides = array<i32>} : memref<2x32xf32, #tpu.memory_space<vmem>>, vector<2x32xf32>,
    return
  }
  func.func @transform_0(%arg0: i32) -> (i32, i32, i32, i32, i32) {
    %c0_i32 = arith.constant 0 : i32
    %c0_i32_0 = arith.constant 0 : i32
    %c0_i32_1 = arith.constant 0 : i32
    %c0_i32_2 = arith.constant 0 : i32
    %c0_i32_3 = arith.constant 0 : i32
    return %arg0, %c0_i32, %c0_i32_0, %c0_i32_1, %c0_i32_2 : i32, i32, i32, i32, i32
  }
  func.func @transform_1(%arg0: i32) -> (i32, i32) {
    %c0_i32 = arith.constant 0 : i32
    %c0_i32_0 = arith.constant 0 : i32
    %c0_i32_1 = arith.constant 0 : i32
    return %c0_i32, %c0_i32_0 : i32, i32
  }
  func.func @transform_2(%arg0: i32) -> (i32, i32, i32, i32) {
    %c0_i32 = arith.constant 0 : i32
    %c0_i32_0 = arith.constant 0 : i32
    %c0_i32_1 = arith.constant 0 : i32
    %c0_i32_2 = arith.constant 0 : i32
    %c0_i32_3 = arith.constant 0 : i32
    return %c0_i32, %c0_i32_0, %c0_i32_1, %c0_i32_2 : i32, i32, i32, i32
  }
  func.func @transform_3(%arg0: i32) -> (i32, i32) {
    %c0_i32 = arith.constant 0 : i32
    %c0_i32_0 = arith.constant 0 : i32
    return %arg0, %c0_i32 : i32, i32
  }
}

</mosaic_0001>

<llo_original>
// kernel: tpu_custom_call.1
$region0: #{tpu_custom_call.1}
  #allocation0 [shape = 'u32[]', space=smem, size = 0x4, offset = 0x4, fixed_abs, tag = 'smem constant byte address 0x4 - core index']
  #allocation1 [shape = 'u32[144,128]{1,0:T(1,128)}', space=vmem, size = 0x12000, scoped, tag = 'internal scratch']
  %s0 = inlined_call_operand.vmem [shape: f32[2,4,8,8,4], index: 0, kind: input, shape index: {}]
  %s1 = inlined_call_operand.vmem [shape: f32[80,128], index: 1, kind: input, shape index: {}]
  %s2 = inlined_call_operand.vmem [shape: f32[10,8,8,8], index: 2, kind: input, shape index: {}]
  %s3 = inlined_call_operand.hbm [shape: f32[2,32], index: 3, kind: output, shape index: {}]
  %s4 = sld [smem:[#allocation0]]
  $region22: #{tpu_custom_call.1} parent=0
    _
  %s6 = ssub.s32 1, %s4
  %s7 = scalar_select 0, %s6, %s4
  $region1: #{tpu_custom_call.1} parent=0
    #allocation2 [shape = 'u8[1024]{0}', space=vmem, size = 0x400, scoped, tag = 'output window, operand 0, single buffered']
    #allocation3 [shape = 's32[1]{0}', space=sflag, size = 0x4, scoped, tag = 'scoped memory for tpu_custom_call.1']
    %8 = vsyncpa [#allocation3], 0
    // Predicated region
    $region2: #{tpu_custom_call.1} parent=1 // pred_check
      _
    $region3: #{tpu_custom_call.1} parent=1 // pred_check_branch
      %10 = sbr.rel (0) target = $region5
    $region4: #{tpu_custom_call.1} parent=1 // pred_region
      _
    $region5: #{tpu_custom_call.1} parent=1 // pred_fallthru
      _
    // Predicated region
    $region6: #{tpu_custom_call.1} parent=1 // pred_check
      _
    $region7: #{tpu_custom_call.1} parent=1 // pred_check_branch
      %12 = sbr.rel (0) target = $region9
    $region8: #{tpu_custom_call.1} parent=1 // pred_region
      _
    $region9: #{tpu_custom_call.1} parent=1 // pred_fallthru
      _
    // Predicated region
    $region10: #{tpu_custom_call.1} parent=1 // pred_check
      _
    $region11: #{tpu_custom_call.1} parent=1 // pred_check_branch
      %14 = sbr.rel (0) target = $region13
    $region12: #{tpu_custom_call.1} parent=1 // pred_region
      _
    $region13: #{tpu_custom_call.1} parent=1 // pred_fallthru
      _
    %v15 = vld [vmem:[%s0] sm:$0xff]
    %v16 = vld [vmem:[%s0 + $0x8] sm:$0xff]
    %v17 = vld [vmem:[%s0 + $0x10] sm:$0xff]
    %v18 = vld [vmem:[%s0 + $0x18] sm:$0xff]
    %v19 = vld [vmem:[%s0 + $0x20] sm:$0xff]
    %v20 = vld [vmem:[%s0 + $0x28] sm:$0xff]
    %v21 = vld [vmem:[%s0 + $0x30] sm:$0xff]
    %v22 = vld [vmem:[%s0 + $0x38] sm:$0xff]
    %v23 = vld [vmem:[%s0 + $0x40] sm:$0xff]
    %v24 = vld [vmem:[%s0 + $0x48] sm:$0xff]
    %v25 = vld [vmem:[%s0 + $0x50] sm:$0xff]
    %v26 = vld [vmem:[%s0 + $0x58] sm:$0xff]
    %v27 = vld [vmem:[%s0 + $0x60] sm:$0xff]
    %v28 = vld [vmem:[%s0 + $0x68] sm:$0xff]
    %v29 = vld [vmem:[%s0 + $0x70] sm:$0xff]
    %v30 = vld [vmem:[%s0 + $0x78] sm:$0xff]
    %v31 = vld [vmem:[%s0 + $0x80] sm:$0xff]
    %v32 = vld [vmem:[%s0 + $0x88] sm:$0xff]
    %v33 = vld [vmem:[%s0 + $0x90] sm:$0xff]
    %v34 = vld [vmem:[%s0 + $0x98] sm:$0xff]
    %v35 = vld [vmem:[%s0 + $0xa0] sm:$0xff]
    %v36 = vld [vmem:[%s0 + $0xa8] sm:$0xff]
    %v37 = vld [vmem:[%s0 + $0xb0] sm:$0xff]
    %v38 = vld [vmem:[%s0 + $0xb8] sm:$0xff]
    %v39 = vld [vmem:[%s0 + $0xc0] sm:$0xff]
    %v40 = vld [vmem:[%s0 + $0xc8] sm:$0xff]
    %v41 = vld [vmem:[%s0 + $0xd0] sm:$0xff]
    %v42 = vld [vmem:[%s0 + $0xd8] sm:$0xff]
    %v43 = vld [vmem:[%s0 + $0xe0] sm:$0xff]
    %v44 = vld [vmem:[%s0 + $0xe8] sm:$0xff]
    %v45 = vld [vmem:[%s0 + $0xf0] sm:$0xff]
    %v46 = vld [vmem:[%s0 + $0xf8] sm:$0xff]
    %v47 = vld [vmem:[%s0 + $0x100] sm:$0xff]
    %v48 = vld [vmem:[%s0 + $0x108] sm:$0xff]
    %v49 = vld [vmem:[%s0 + $0x110] sm:$0xff]
    %v50 = vld [vmem:[%s0 + $0x118] sm:$0xff]
    %v51 = vld [vmem:[%s0 + $0x120] sm:$0xff]
    %v52 = vld [vmem:[%s0 + $0x128] sm:$0xff]
    %v53 = vld [vmem:[%s0 + $0x130] sm:$0xff]
    %v54 = vld [vmem:[%s0 + $0x138] sm:$0xff]
    %v55 = vld [vmem:[%s0 + $0x140] sm:$0xff]
    %v56 = vld [vmem:[%s0 + $0x148] sm:$0xff]
    %v57 = vld [vmem:[%s0 + $0x150] sm:$0xff]
    %v58 = vld [vmem:[%s0 + $0x158] sm:$0xff]
    %v59 = vld [vmem:[%s0 + $0x160] sm:$0xff]
    %v60 = vld [vmem:[%s0 + $0x168] sm:$0xff]
    %v61 = vld [vmem:[%s0 + $0x170] sm:$0xff]
    %v62 = vld [vmem:[%s0 + $0x178] sm:$0xff]
    %v63 = vld [vmem:[%s0 + $0x180] sm:$0xff]
    %v64 = vld [vmem:[%s0 + $0x188] sm:$0xff]
    %v65 = vld [vmem:[%s0 + $0x190] sm:$0xff]
    %v66 = vld [vmem:[%s0 + $0x198] sm:$0xff]
    %v67 = vld [vmem:[%s0 + $0x1a0] sm:$0xff]
    %v68 = vld [vmem:[%s0 + $0x1a8] sm:$0xff]
    %v69 = vld [vmem:[%s0 + $0x1b0] sm:$0xff]
    %v70 = vld [vmem:[%s0 + $0x1b8] sm:$0xff]
    %v71 = vld [vmem:[%s0 + $0x1c0] sm:$0xff]
    %v72 = vld [vmem:[%s0 + $0x1c8] sm:$0xff]
    %v73 = vld [vmem:[%s0 + $0x1d0] sm:$0xff]
    %v74 = vld [vmem:[%s0 + $0x1d8] sm:$0xff]
    %v75 = vld [vmem:[%s0 + $0x1e0] sm:$0xff]
    %v76 = vld [vmem:[%s0 + $0x1e8] sm:$0xff]
    %v77 = vld [vmem:[%s0 + $0x1f0] sm:$0xff]
    %v78 = vld [vmem:[%s0 + $0x1f8] sm:$0xff]
    %v79 = vld [vmem:[%s1] sm:$0xf]
    %v80 = vld [vmem:[%s1 + $0x48] sm:$0x1]
    %v81 = vlaneseq
    %v82 = vshrl.u32 %v81, 7
    %v83 = vsub.s32 0, %v82
    %v84 = vrot.slane %v80, %v83
    %vm85 = vcmask 31744
    %v87 = vsel %vm85, %v15, 0
    %v90 = vsel %vm85, %v16, 0
    %v93 = vsel %vm85, %v17, 0
    %v96 = vsel %vm85, %v18, 0
    %v99 = vsel %vm85, %v19, 0
    %v102 = vsel %vm85, %v20, 0
    %v105 = vsel %vm85, %v21, 0
    %v108 = vsel %vm85, %v22, 0
    %v111 = vsel %vm85, %v23, 0
    %v114 = vsel %vm85, %v24, 0
    %v117 = vsel %vm85, %v25, 0
    %v120 = vsel %vm85, %v26, 0
    %v123 = vsel %vm85, %v27, 0
    %v126 = vsel %vm85, %v28, 0
    %v129 = vsel %vm85, %v29, 0
    %v132 = vsel %vm85, %v30, 0
    %v135 = vsel %vm85, %v31, 0
    %v138 = vsel %vm85, %v32, 0
    %v141 = vsel %vm85, %v33, 0
    %v144 = vsel %vm85, %v34, 0
    %v147 = vsel %vm85, %v35, 0
    %v150 = vsel %vm85, %v36, 0
    %v153 = vsel %vm85, %v37, 0
    %v156 = vsel %vm85, %v38, 0
    %v159 = vsel %vm85, %v39, 0
    %v162 = vsel %vm85, %v40, 0
    %v165 = vsel %vm85, %v41, 0
    %v168 = vsel %vm85, %v42, 0
    %v171 = vsel %vm85, %v43, 0
    %v174 = vsel %vm85, %v44, 0
    %v177 = vsel %vm85, %v45, 0
    %v180 = vsel %vm85, %v46, 0
    %v183 = vsel %vm85, %v47, 0
    %v186 = vsel %vm85, %v48, 0
    %v189 = vsel %vm85, %v49, 0
    %v192 = vsel %vm85, %v50, 0
    %v195 = vsel %vm85, %v51, 0
    %v198 = vsel %vm85, %v52, 0
    %v201 = vsel %vm85, %v53, 0
    %v204 = vsel %vm85, %v54, 0
    %v207 = vsel %vm85, %v55, 0
    %v210 = vsel %vm85, %v56, 0
    %v213 = vsel %vm85, %v57, 0
    %v216 = vsel %vm85, %v58, 0
    %v219 = vsel %vm85, %v59, 0
    %v222 = vsel %vm85, %v60, 0
    %v225 = vsel %vm85, %v61, 0
    %v228 = vsel %vm85, %v62, 0
    %v231 = vsel %vm85, %v63, 0
    %v234 = vsel %vm85, %v64, 0
    %v237 = vsel %vm85, %v65, 0
    %v240 = vsel %vm85, %v66, 0
    %v243 = vsel %vm85, %v67, 0
    %v246 = vsel %vm85, %v68, 0
    %v249 = vsel %vm85, %v69, 0
    %v252 = vsel %vm85, %v70, 0
    %v255 = vsel %vm85, %v71, 0
    %v258 = vsel %vm85, %v72, 0
    %v261 = vsel %vm85, %v73, 0
    %v264 = vsel %vm85, %v74, 0
    %v267 = vsel %vm85, %v75, 0
    %v270 = vsel %vm85, %v76, 0
    %v273 = vsel %vm85, %v77, 0
    %v276 = vsel %vm85, %v78, 0
    %vm278 = vcmask 1043456
    %v280 = vsel %vm278, %v79, 0
    %282 = vmatprep.subr.mxu0 0.0
    %283 = vmatpush1.msra.mxu0 0.0
    %284 = vmatprep.subr.mxu0 0.0
    %285 = vmatpush1.msra.mxu0 0.0
    %286 = vmatprep.subr.mxu0 0.0
    %287 = vmatpush1.msra.mxu0 0.0
    %288 = vmatprep.subr.mxu0 0.0
    %289 = vmatpush1.msra.mxu0 0.0
    %290 = vmatprep.subr.mxu0 0.0
    %291 = vmatpush1.msra.mxu0 0.0
    %292 = vmatprep.subr.mxu0 0.0
    %293 = vmatpush1.msra.mxu0 0.0
    %294 = vmatprep.subr.mxu0 0.0
    %295 = vmatpush1.msra.mxu0 0.0
    %296 = vmatprep.subr.mxu0 0.0
    %297 = vmatpush1.msra.mxu0 0.0
    %298 = vmatprep.subr.mxu0 0.0
    %299 = vmatpush1.msra.mxu0 0.0
    %300 = vmatprep.subr.mxu0 0.0
    %301 = vmatpush1.msra.mxu0 0.0
    %302 = vmatprep.subr.mxu0 0.0
    %303 = vmatpush1.msra.mxu0 0.0
    %304 = vmatprep.subr.mxu0 0.0
    %305 = vmatpush1.msra.mxu0 0.0
    %306 = vmatprep.subr.mxu0 0.0
    %307 = vmatpush1.msra.mxu0 0.0
    %308 = vmatprep.subr.mxu0 0.0
    %309 = vmatpush1.msra.mxu0 0.0
    %310 = vmatprep.subr.mxu0 0.0
    %311 = vmatpush1.msra.mxu0 0.0
    %312 = vmatprep.subr.mxu0 0.0
    %313 = vmatpush1.msra.mxu0 %v280
    %314 = vmatprep.subr.mxu0 0.0
    %315 = vmatpush2.msra.mxu0 0.0
    %316 = vmatprep.subr.mxu0 0.0
    %317 = vmatpush2.msra.mxu0 0.0
    %318 = vmatprep.subr.mxu0 0.0
    %319 = vmatpush2.msra.mxu0 0.0
    %320 = vmatprep.subr.mxu0 0.0
    %321 = vmatpush2.msra.mxu0 0.0
    %322 = vmatprep.subr.mxu0 0.0
    %323 = vmatpush2.msra.mxu0 0.0
    %324 = vmatprep.subr.mxu0 0.0
    %325 = vmatpush2.msra.mxu0 0.0
    %326 = vmatprep.subr.mxu0 0.0
    %327 = vmatpush2.msra.mxu0 0.0
    %328 = vmatprep.subr.mxu0 0.0
    %329 = vmatpush2.msra.mxu0 0.0
    %330 = vmatprep.subr.mxu0 0.0
    %331 = vmatpush2.msra.mxu0 0.0
    %332 = vmatprep.subr.mxu0 0.0
    %333 = vmatpush2.msra.mxu0 0.0
    %334 = vmatprep.subr.mxu0 0.0
    %335 = vmatpush2.msra.mxu0 0.0
    %336 = vmatprep.subr.mxu0 0.0
    %337 = vmatpush2.msra.mxu0 0.0
    %338 = vmatprep.subr.mxu0 0.0
    %339 = vmatpush2.msra.mxu0 0.0
    %340 = vmatprep.subr.mxu0 0.0
    %341 = vmatpush2.msra.mxu0 0.0
    %342 = vmatprep.subr.mxu0 0.0
    %343 = vmatpush2.msra.mxu0 0.0
    %344 = vmatprep.subr.mxu0 0.0
    %345 = vmatpush2.msra.mxu0 0.0
    %346 = vmatprep.mubr.f32.mxu0 0.0
    %347 = vmatmul.mubr.f32.gmra.mxu0 %v87
    %v348 = vpop.f32.mrf.mxu0
    %v349 = vadd.f32 %v84, %v348
    %v350 = vpop.f32.mrf.mxu0
    %351 = vmatprep.mubr.f32.mxu0 0.0
    %352 = vmatmul.mubr.f32.gmra.mxu0 %v90
    %v353 = vpop.f32.mrf.mxu0
    %v354 = vadd.f32 %v84, %v353
    %v355 = vpop.f32.mrf.mxu0
    %356 = vmatprep.mubr.f32.mxu0 0.0
    %357 = vmatmul.mubr.f32.gmra.mxu0 %v93
    %v358 = vpop.f32.mrf.mxu0
    %v359 = vadd.f32 %v84, %v358
    %v360 = vpop.f32.mrf.mxu0
    %361 = vmatprep.mubr.f32.mxu0 0.0
    %362 = vmatmul.mubr.f32.gmra.mxu0 %v96
    %v363 = vpop.f32.mrf.mxu0
    %v364 = vadd.f32 %v84, %v363
    %v365 = vpop.f32.mrf.mxu0
    %366 = vmatprep.mubr.f32.mxu0 0.0
    %367 = vmatmul.mubr.f32.gmra.mxu0 %v99
    %v368 = vpop.f32.mrf.mxu0
    %v369 = vadd.f32 %v84, %v368
    %v370 = vpop.f32.mrf.mxu0
    %371 = vmatprep.mubr.f32.mxu0 0.0
    %372 = vmatmul.mubr.f32.gmra.mxu0 %v102
    %v373 = vpop.f32.mrf.mxu0
    %v374 = vadd.f32 %v84, %v373
    %v375 = vpop.f32.mrf.mxu0
    %376 = vmatprep.mubr.f32.mxu0 0.0
    %377 = vmatmul.mubr.f32.gmra.mxu0 %v105
    %v378 = vpop.f32.mrf.mxu0
    %v379 = vadd.f32 %v84, %v378
    %v380 = vpop.f32.mrf.mxu0
    %381 = vmatprep.mubr.f32.mxu0 0.0
    %382 = vmatmul.mubr.f32.gmra.mxu0 %v108
    %v383 = vpop.f32.mrf.mxu0
    %v384 = vadd.f32 %v84, %v383
    %v385 = vpop.f32.mrf.mxu0
    %386 = vmatprep.mubr.f32.mxu0 0.0
    %387 = vmatmul.mubr.f32.gmra.mxu0 %v111
    %v388 = vpop.f32.mrf.mxu0
    %v389 = vadd.f32 %v84, %v388
    %v390 = vpop.f32.mrf.mxu0
    %391 = vmatprep.mubr.f32.mxu0 0.0
    %392 = vmatmul.mubr.f32.gmra.mxu0 %v114
    %v393 = vpop.f32.mrf.mxu0
    %v394 = vadd.f32 %v84, %v393
    %v395 = vpop.f32.mrf.mxu0
    %396 = vmatprep.mubr.f32.mxu0 0.0
    %397 = vmatmul.mubr.f32.gmra.mxu0 %v117
    %v398 = vpop.f32.mrf.mxu0
    %v399 = vadd.f32 %v84, %v398
    %v400 = vpop.f32.mrf.mxu0
    %401 = vmatprep.mubr.f32.mxu0 0.0
    %402 = vmatmul.mubr.f32.gmra.mxu0 %v120
    %v403 = vpop.f32.mrf.mxu0
    %v404 = vadd.f32 %v84, %v403
    %v405 = vpop.f32.mrf.mxu0
    %406 = vmatprep.mubr.f32.mxu0 0.0
    %407 = vmatmul.mubr.f32.gmra.mxu0 %v123
    %v408 = vpop.f32.mrf.mxu0
    %v409 = vadd.f32 %v84, %v408
    %v410 = vpop.f32.mrf.mxu0
    %411 = vmatprep.mubr.f32.mxu0 0.0
    %412 = vmatmul.mubr.f32.gmra.mxu0 %v126
    %v413 = vpop.f32.mrf.mxu0
    %v414 = vadd.f32 %v84, %v413
    %v415 = vpop.f32.mrf.mxu0
    %416 = vmatprep.mubr.f32.mxu0 0.0
    %417 = vmatmul.mubr.f32.gmra.mxu0 %v129
    %v418 = vpop.f32.mrf.mxu0
    %v419 = vadd.f32 %v84, %v418
    %v420 = vpop.f32.mrf.mxu0
    %421 = vmatprep.mubr.f32.mxu0 0.0
    %422 = vmatmul.mubr.f32.gmra.mxu0 %v132
    %v423 = vpop.f32.mrf.mxu0
    %v424 = vadd.f32 %v84, %v423
    %v425 = vpop.f32.mrf.mxu0
    %426 = vmatprep.mubr.f32.mxu0 0.0
    %427 = vmatmul.mubr.f32.gmra.mxu0 %v135
    %v428 = vpop.f32.mrf.mxu0
    %v429 = vadd.f32 %v84, %v428
    %v430 = vpop.f32.mrf.mxu0
    %431 = vmatprep.mubr.f32.mxu0 0.0
    %432 = vmatmul.mubr.f32.gmra.mxu0 %v138
    %v433 = vpop.f32.mrf.mxu0
    %v434 = vadd.f32 %v84, %v433
    %v435 = vpop.f32.mrf.mxu0
    %436 = vmatprep.mubr.f32.mxu0 0.0
    %437 = vmatmul.mubr.f32.gmra.mxu0 %v141
    %v438 = vpop.f32.mrf.mxu0
    %v439 = vadd.f32 %v84, %v438
    %v440 = vpop.f32.mrf.mxu0
    %441 = vmatprep.mubr.f32.mxu0 0.0
    %442 = vmatmul.mubr.f32.gmra.mxu0 %v144
    %v443 = vpop.f32.mrf.mxu0
    %v444 = vadd.f32 %v84, %v443
    %v445 = vpop.f32.mrf.mxu0
    %446 = vmatprep.mubr.f32.mxu0 0.0
    %447 = vmatmul.mubr.f32.gmra.mxu0 %v147
    %v448 = vpop.f32.mrf.mxu0
    %v449 = vadd.f32 %v84, %v448
    %v450 = vpop.f32.mrf.mxu0
    %451 = vmatprep.mubr.f32.mxu0 0.0
    %452 = vmatmul.mubr.f32.gmra.mxu0 %v150
    %v453 = vpop.f32.mrf.mxu0
    %v454 = vadd.f32 %v84, %v453
    %v455 = vpop.f32.mrf.mxu0
    %456 = vmatprep.mubr.f32.mxu0 0.0
    %457 = vmatmul.mubr.f32.gmra.mxu0 %v153
    %v458 = vpop.f32.mrf.mxu0
    %v459 = vadd.f32 %v84, %v458
    %v460 = vpop.f32.mrf.mxu0
    %461 = vmatprep.mubr.f32.mxu0 0.0
    %462 = vmatmul.mubr.f32.gmra.mxu0 %v156
    %v463 = vpop.f32.mrf.mxu0
    %v464 = vadd.f32 %v84, %v463
    %v465 = vpop.f32.mrf.mxu0
    %466 = vmatprep.mubr.f32.mxu0 0.0
    %467 = vmatmul.mubr.f32.gmra.mxu0 %v159
    %v468 = vpop.f32.mrf.mxu0
    %v469 = vadd.f32 %v84, %v468
    %v470 = vpop.f32.mrf.mxu0
    %471 = vmatprep.mubr.f32.mxu0 0.0
    %472 = vmatmul.mubr.f32.gmra.mxu0 %v162
    %v473 = vpop.f32.mrf.mxu0
    %v474 = vadd.f32 %v84, %v473
    %v475 = vpop.f32.mrf.mxu0
    %476 = vmatprep.mubr.f32.mxu0 0.0
    %477 = vmatmul.mubr.f32.gmra.mxu0 %v165
    %v478 = vpop.f32.mrf.mxu0
    %v479 = vadd.f32 %v84, %v478
    %v480 = vpop.f32.mrf.mxu0
    %481 = vmatprep.mubr.f32.mxu0 0.0
    %482 = vmatmul.mubr.f32.gmra.mxu0 %v168
    %v483 = vpop.f32.mrf.mxu0
    %v484 = vadd.f32 %v84, %v483
    %v485 = vpop.f32.mrf.mxu0
    %486 = vmatprep.mubr.f32.mxu0 0.0
    %487 = vmatmul.mubr.f32.gmra.mxu0 %v171
    %v488 = vpop.f32.mrf.mxu0
    %v489 = vadd.f32 %v84, %v488
    %v490 = vpop.f32.mrf.mxu0
    %491 = vmatprep.mubr.f32.mxu0 0.0
    %492 = vmatmul.mubr.f32.gmra.mxu0 %v174
    %v493 = vpop.f32.mrf.mxu0
    %v494 = vadd.f32 %v84, %v493
    %v495 = vpop.f32.mrf.mxu0
    %496 = vmatprep.mubr.f32.mxu0 0.0
    %497 = vmatmul.mubr.f32.gmra.mxu0 %v177
    %v498 = vpop.f32.mrf.mxu0
    %v499 = vadd.f32 %v84, %v498
    %v500 = vpop.f32.mrf.mxu0
    %501 = vmatprep.mubr.f32.mxu0 0.0
    %502 = vmatmul.mubr.f32.gmra.mxu0 %v180
    %v503 = vpop.f32.mrf.mxu0
    %v504 = vadd.f32 %v84, %v503
    %v505 = vpop.f32.mrf.mxu0
    %506 = vmatprep.mubr.f32.mxu0 0.0
    %507 = vmatmul.mubr.f32.gmra.mxu0 %v183
    %v508 = vpop.f32.mrf.mxu0
    %v509 = vadd.f32 %v84, %v508
    %v510 = vpop.f32.mrf.mxu0
    %511 = vmatprep.mubr.f32.mxu0 0.0
    %512 = vmatmul.mubr.f32.gmra.mxu0 %v186
    %v513 = vpop.f32.mrf.mxu0
    %v514 = vadd.f32 %v84, %v513
    %v515 = vpop.f32.mrf.mxu0
    %516 = vmatprep.mubr.f32.mxu0 0.0
    %517 = vmatmul.mubr.f32.gmra.mxu0 %v189
    %v518 = vpop.f32.mrf.mxu0
    %v519 = vadd.f32 %v84, %v518
    %v520 = vpop.f32.mrf.mxu0
    %521 = vmatprep.mubr.f32.mxu0 0.0
    %522 = vmatmul.mubr.f32.gmra.mxu0 %v192
    %v523 = vpop.f32.mrf.mxu0
    %v524 = vadd.f32 %v84, %v523
    %v525 = vpop.f32.mrf.mxu0
    %526 = vmatprep.mubr.f32.mxu0 0.0
    %527 = vmatmul.mubr.f32.gmra.mxu0 %v195
    %v528 = vpop.f32.mrf.mxu0
    %v529 = vadd.f32 %v84, %v528
    %v530 = vpop.f32.mrf.mxu0
    %531 = vmatprep.mubr.f32.mxu0 0.0
    %532 = vmatmul.mubr.f32.gmra.mxu0 %v198
    %v533 = vpop.f32.mrf.mxu0
    %v534 = vadd.f32 %v84, %v533
    %v535 = vpop.f32.mrf.mxu0
    %536 = vmatprep.mubr.f32.mxu0 0.0
    %537 = vmatmul.mubr.f32.gmra.mxu0 %v201
    %v538 = vpop.f32.mrf.mxu0
    %v539 = vadd.f32 %v84, %v538
    %v540 = vpop.f32.mrf.mxu0
    %541 = vmatprep.mubr.f32.mxu0 0.0
    %542 = vmatmul.mubr.f32.gmra.mxu0 %v204
    %v543 = vpop.f32.mrf.mxu0
    %v544 = vadd.f32 %v84, %v543
    %v545 = vpop.f32.mrf.mxu0
    %546 = vmatprep.mubr.f32.mxu0 0.0
    %547 = vmatmul.mubr.f32.gmra.mxu0 %v207
    %v548 = vpop.f32.mrf.mxu0
    %v549 = vadd.f32 %v84, %v548
    %v550 = vpop.f32.mrf.mxu0
    %551 = vmatprep.mubr.f32.mxu0 0.0
    %552 = vmatmul.mubr.f32.gmra.mxu0 %v210
    %v553 = vpop.f32.mrf.mxu0
    %v554 = vadd.f32 %v84, %v553
    %v555 = vpop.f32.mrf.mxu0
    %556 = vmatprep.mubr.f32.mxu0 0.0
    %557 = vmatmul.mubr.f32.gmra.mxu0 %v213
    %v558 = vpop.f32.mrf.mxu0
    %v559 = vadd.f32 %v84, %v558
    %v560 = vpop.f32.mrf.mxu0
    %561 = vmatprep.mubr.f32.mxu0 0.0
    %562 = vmatmul.mubr.f32.gmra.mxu0 %v216
    %v563 = vpop.f32.mrf.mxu0
    %v564 = vadd.f32 %v84, %v563
    %v565 = vpop.f32.mrf.mxu0
    %566 = vmatprep.mubr.f32.mxu0 0.0
    %567 = vmatmul.mubr.f32.gmra.mxu0 %v219
    %v568 = vpop.f32.mrf.mxu0
    %v569 = vadd.f32 %v84, %v568
    %v570 = vpop.f32.mrf.mxu0
    %571 = vmatprep.mubr.f32.mxu0 0.0
    %572 = vmatmul.mubr.f32.gmra.mxu0 %v222
    %v573 = vpop.f32.mrf.mxu0
    %v574 = vadd.f32 %v84, %v573
    %v575 = vpop.f32.mrf.mxu0
    %576 = vmatprep.mubr.f32.mxu0 0.0
    %577 = vmatmul.mubr.f32.gmra.mxu0 %v225
    %v578 = vpop.f32.mrf.mxu0
    %v579 = vadd.f32 %v84, %v578
    %v580 = vpop.f32.mrf.mxu0
    %581 = vmatprep.mubr.f32.mxu0 0.0
    %582 = vmatmul.mubr.f32.gmra.mxu0 %v228
    %v583 = vpop.f32.mrf.mxu0
    %v584 = vadd.f32 %v84, %v583
    %v585 = vpop.f32.mrf.mxu0
    %586 = vmatprep.mubr.f32.mxu0 0.0
    %587 = vmatmul.mubr.f32.gmra.mxu0 %v231
    %v588 = vpop.f32.mrf.mxu0
    %v589 = vadd.f32 %v84, %v588
    %v590 = vpop.f32.mrf.mxu0
    %591 = vmatprep.mubr.f32.mxu0 0.0
    %592 = vmatmul.mubr.f32.gmra.mxu0 %v234
    %v593 = vpop.f32.mrf.mxu0
    %v594 = vadd.f32 %v84, %v593
    %v595 = vpop.f32.mrf.mxu0
    %596 = vmatprep.mubr.f32.mxu0 0.0
    %597 = vmatmul.mubr.f32.gmra.mxu0 %v237
    %v598 = vpop.f32.mrf.mxu0
    %v599 = vadd.f32 %v84, %v598
    %v600 = vpop.f32.mrf.mxu0
    %601 = vmatprep.mubr.f32.mxu0 0.0
    %602 = vmatmul.mubr.f32.gmra.mxu0 %v240
    %v603 = vpop.f32.mrf.mxu0
    %v604 = vadd.f32 %v84, %v603
    %v605 = vpop.f32.mrf.mxu0
    %606 = vmatprep.mubr.f32.mxu0 0.0
    %607 = vmatmul.mubr.f32.gmra.mxu0 %v243
    %v608 = vpop.f32.mrf.mxu0
    %v609 = vadd.f32 %v84, %v608
    %v610 = vpop.f32.mrf.mxu0
    %611 = vmatprep.mubr.f32.mxu0 0.0
    %612 = vmatmul.mubr.f32.gmra.mxu0 %v246
    %v613 = vpop.f32.mrf.mxu0
    %v614 = vadd.f32 %v84, %v613
    %v615 = vpop.f32.mrf.mxu0
    %616 = vmatprep.mubr.f32.mxu0 0.0
    %617 = vmatmul.mubr.f32.gmra.mxu0 %v249
    %v618 = vpop.f32.mrf.mxu0
    %v619 = vadd.f32 %v84, %v618
    %v620 = vpop.f32.mrf.mxu0
    %621 = vmatprep.mubr.f32.mxu0 0.0
    %622 = vmatmul.mubr.f32.gmra.mxu0 %v252
    %v623 = vpop.f32.mrf.mxu0
    %v624 = vadd.f32 %v84, %v623
    %v625 = vpop.f32.mrf.mxu0
    %626 = vmatprep.mubr.f32.mxu0 0.0
    %627 = vmatmul.mubr.f32.gmra.mxu0 %v255
    %v628 = vpop.f32.mrf.mxu0
    %v629 = vadd.f32 %v84, %v628
    %v630 = vpop.f32.mrf.mxu0
    %631 = vmatprep.mubr.f32.mxu0 0.0
    %632 = vmatmul.mubr.f32.gmra.mxu0 %v258
    %v633 = vpop.f32.mrf.mxu0
    %v634 = vadd.f32 %v84, %v633
    %v635 = vpop.f32.mrf.mxu0
    %636 = vmatprep.mubr.f32.mxu0 0.0
    %637 = vmatmul.mubr.f32.gmra.mxu0 %v261
    %v638 = vpop.f32.mrf.mxu0
    %v639 = vadd.f32 %v84, %v638
    %v640 = vpop.f32.mrf.mxu0
    %641 = vmatprep.mubr.f32.mxu0 0.0
    %642 = vmatmul.mubr.f32.gmra.mxu0 %v264
    %v643 = vpop.f32.mrf.mxu0
    %v644 = vadd.f32 %v84, %v643
    %v645 = vpop.f32.mrf.mxu0
    %646 = vmatprep.mubr.f32.mxu0 0.0
    %647 = vmatmul.mubr.f32.gmra.mxu0 %v267
    %v648 = vpop.f32.mrf.mxu0
    %v649 = vadd.f32 %v84, %v648
    %v650 = vpop.f32.mrf.mxu0
    %651 = vmatprep.mubr.f32.mxu0 0.0
    %652 = vmatmul.mubr.f32.gmra.mxu0 %v270
    %v653 = vpop.f32.mrf.mxu0
    %v654 = vadd.f32 %v84, %v653
    %v655 = vpop.f32.mrf.mxu0
    %656 = vmatprep.mubr.f32.mxu0 0.0
    %657 = vmatmul.mubr.f32.gmra.mxu0 %v273
    %v658 = vpop.f32.mrf.mxu0
    %v659 = vadd.f32 %v84, %v658
    %v660 = vpop.f32.mrf.mxu0
    %661 = vmatprep.mubr.f32.mxu0 0.0
    %662 = vmatmul.mubr.f32.gmra.mxu0 %v276
    %v663 = vpop.f32.mrf.mxu0
    %v664 = vadd.f32 %v84, %v663
    %v665 = vpop.f32.mrf.mxu0
    %666 = vdwg.mxu0
    %v667 = vmax.f32 %v349, 0.0
    %v668 = vmax.f32 %v354, 0.0
    %v669 = vmax.f32 %v359, 0.0
    %v670 = vmax.f32 %v364, 0.0
    %v671 = vmax.f32 %v369, 0.0
    %v672 = vmax.f32 %v374, 0.0
    %v673 = vmax.f32 %v379, 0.0
    %v674 = vmax.f32 %v384, 0.0
    %v675 = vmax.f32 %v389, 0.0
    %v676 = vmax.f32 %v394, 0.0
    %v677 = vmax.f32 %v399, 0.0
    %v678 = vmax.f32 %v404, 0.0
    %v679 = vmax.f32 %v409, 0.0
    %v680 = vmax.f32 %v414, 0.0
    %v681 = vmax.f32 %v419, 0.0
    %v682 = vmax.f32 %v424, 0.0
    %v683 = vmax.f32 %v429, 0.0
    %v684 = vmax.f32 %v434, 0.0
    %v685 = vmax.f32 %v439, 0.0
    %v686 = vmax.f32 %v444, 0.0
    %v687 = vmax.f32 %v449, 0.0
    %v688 = vmax.f32 %v454, 0.0
    %v689 = vmax.f32 %v459, 0.0
    %v690 = vmax.f32 %v464, 0.0
    %v691 = vmax.f32 %v469, 0.0
    %v692 = vmax.f32 %v474, 0.0
    %v693 = vmax.f32 %v479, 0.0
    %v694 = vmax.f32 %v484, 0.0
    %v695 = vmax.f32 %v489, 0.0
    %v696 = vmax.f32 %v494, 0.0
    %v697 = vmax.f32 %v499, 0.0
    %v698 = vmax.f32 %v504, 0.0
    %v699 = vmax.f32 %v509, 0.0
    %v700 = vmax.f32 %v514, 0.0
    %v701 = vmax.f32 %v519, 0.0
    %v702 = vmax.f32 %v524, 0.0
    %v703 = vmax.f32 %v529, 0.0
    %v704 = vmax.f32 %v534, 0.0
    %v705 = vmax.f32 %v539, 0.0
    %v706 = vmax.f32 %v544, 0.0
    %v707 = vmax.f32 %v549, 0.0
    %v708 = vmax.f32 %v554, 0.0
    %v709 = vmax.f32 %v559, 0.0
    %v710 = vmax.f32 %v564, 0.0
    %v711 = vmax.f32 %v569, 0.0
    %v712 = vmax.f32 %v574, 0.0
    %v713 = vmax.f32 %v579, 0.0
    %v714 = vmax.f32 %v584, 0.0
    %v715 = vmax.f32 %v589, 0.0
    %v716 = vmax.f32 %v594, 0.0
    %v717 = vmax.f32 %v599, 0.0
    %v718 = vmax.f32 %v604, 0.0
    %v719 = vmax.f32 %v609, 0.0
    %v720 = vmax.f32 %v614, 0.0
    %v721 = vmax.f32 %v619, 0.0
    %v722 = vmax.f32 %v624, 0.0
    %v723 = vmax.f32 %v629, 0.0
    %v724 = vmax.f32 %v634, 0.0
    %v725 = vmax.f32 %v639, 0.0
    %v726 = vmax.f32 %v644, 0.0
    %v727 = vmax.f32 %v649, 0.0
    %v728 = vmax.f32 %v654, 0.0
    %v729 = vmax.f32 %v659, 0.0
    %v730 = vmax.f32 %v664, 0.0
    %v731 = vld [vmem:[%s1 + $0x8] sm:$0xff]
    %v732 = vld [vmem:[%s1 + $0x10] sm:$0x1]
    %v733 = vlaneseq
    %v734 = vshrl.u32 %v733, 7
    %v735 = vsub.s32 4, %v734
    %v736 = vrot.slane %v731, %v735
    %v737 = vmul.f32 %v667, %v736
    %v738 = vmul.f32 %v668, %v736
    %v739 = vmul.f32 %v669, %v736
    %v740 = vmul.f32 %v670, %v736
    %v741 = vmul.f32 %v671, %v736
    %v742 = vmul.f32 %v672, %v736
    %v743 = vmul.f32 %v673, %v736
    %v744 = vmul.f32 %v674, %v736
    %v745 = vmul.f32 %v699, %v736
    %v746 = vmul.f32 %v700, %v736
    %v747 = vmul.f32 %v701, %v736
    %v748 = vmul.f32 %v702, %v736
    %v749 = vmul.f32 %v703, %v736
    %v750 = vmul.f32 %v704, %v736
    %v751 = vmul.f32 %v705, %v736
    %v752 = vmul.f32 %v706, %v736
    %v753 = vlaneseq
    %v754 = vshrl.u32 %v753, 7
    %v755 = vsub.s32 5, %v754
    %v756 = vrot.slane %v731, %v755
    %v757 = vmul.f32 %v675, %v756
    %v758 = vmul.f32 %v676, %v756
    %v759 = vmul.f32 %v677, %v756
    %v760 = vmul.f32 %v678, %v756
    %v761 = vmul.f32 %v679, %v756
    %v762 = vmul.f32 %v680, %v756
    %v763 = vmul.f32 %v681, %v756
    %v764 = vmul.f32 %v682, %v756
    %v765 = vmul.f32 %v707, %v756
    %v766 = vmul.f32 %v708, %v756
    %v767 = vmul.f32 %v709, %v756
    %v768 = vmul.f32 %v710, %v756
    %v769 = vmul.f32 %v711, %v756
    %v770 = vmul.f32 %v712, %v756
    %v771 = vmul.f32 %v713, %v756
    %v772 = vmul.f32 %v714, %v756
    %v773 = vadd.f32 %v737, %v757
    %v774 = vadd.f32 %v738, %v758
    %v775 = vadd.f32 %v739, %v759
    %v776 = vadd.f32 %v740, %v760
    %v777 = vadd.f32 %v741, %v761
    %v778 = vadd.f32 %v742, %v762
    %v779 = vadd.f32 %v743, %v763
    %v780 = vadd.f32 %v744, %v764
    %v781 = vadd.f32 %v745, %v765
    %v782 = vadd.f32 %v746, %v766
    %v783 = vadd.f32 %v747, %v767
    %v784 = vadd.f32 %v748, %v768
    %v785 = vadd.f32 %v749, %v769
    %v786 = vadd.f32 %v750, %v770
    %v787 = vadd.f32 %v751, %v771
    %v788 = vadd.f32 %v752, %v772
    %v805 = vrot.slane %v675, 7
    %v806 = vrot.slane %v676, 7
    %v807 = vrot.slane %v677, 7
    %v808 = vrot.slane %v678, 7
    %v809 = vrot.slane %v679, 7
    %v810 = vrot.slane %v680, 7
    %v811 = vrot.slane %v681, 7
    %v812 = vrot.slane %v682, 7
    %v813 = vrot.slane %v707, 7
    %v814 = vrot.slane %v708, 7
    %v815 = vrot.slane %v709, 7
    %v816 = vrot.slane %v710, 7
    %v817 = vrot.slane %v711, 7
    %v818 = vrot.slane %v712, 7
    %v819 = vrot.slane %v713, 7
    %v820 = vrot.slane %v714, 7
    %vm837 = vcmask 1040384
    %v838 = vsel %vm837, 0.0, %v805
    %v839 = vsel %vm837, 0.0, %v806
    %v840 = vsel %vm837, 0.0, %v807
    %v841 = vsel %vm837, 0.0, %v808
    %v842 = vsel %vm837, 0.0, %v809
    %v843 = vsel %vm837, 0.0, %v810
    %v844 = vsel %vm837, 0.0, %v811
    %v845 = vsel %vm837, 0.0, %v812
    %v846 = vsel %vm837, 0.0, %v813
    %v847 = vsel %vm837, 0.0, %v814
    %v848 = vsel %vm837, 0.0, %v815
    %v849 = vsel %vm837, 0.0, %v816
    %v850 = vsel %vm837, 0.0, %v817
    %v851 = vsel %vm837, 0.0, %v818
    %v852 = vsel %vm837, 0.0, %v819
    %v853 = vsel %vm837, 0.0, %v820
    %v854 = vlaneseq
    %v855 = vshrl.u32 %v854, 7
    %v856 = vsub.s32 3, %v855
    %v857 = vrot.slane %v731, %v856
    %v858 = vmul.f32 %v838, %v857
    %v859 = vmul.f32 %v839, %v857
    %v860 = vmul.f32 %v840, %v857
    %v861 = vmul.f32 %v841, %v857
    %v862 = vmul.f32 %v842, %v857
    %v863 = vmul.f32 %v843, %v857
    %v864 = vmul.f32 %v844, %v857
    %v865 = vmul.f32 %v845, %v857
    %v866 = vmul.f32 %v846, %v857
    %v867 = vmul.f32 %v847, %v857
    %v868 = vmul.f32 %v848, %v857
    %v869 = vmul.f32 %v849, %v857
    %v870 = vmul.f32 %v850, %v857
    %v871 = vmul.f32 %v851, %v857
    %v872 = vmul.f32 %v852, %v857
    %v873 = vmul.f32 %v853, %v857
    %v874 = vadd.f32 %v773, %v858
    %v875 = vadd.f32 %v774, %v859
    %v876 = vadd.f32 %v775, %v860
    %v877 = vadd.f32 %v776, %v861
    %v878 = vadd.f32 %v777, %v862
    %v879 = vadd.f32 %v778, %v863
    %v880 = vadd.f32 %v779, %v864
    %v881 = vadd.f32 %v780, %v865
    %v882 = vadd.f32 %v781, %v866
    %v883 = vadd.f32 %v782, %v867
    %v884 = vadd.f32 %v783, %v868
    %v885 = vadd.f32 %v784, %v869
    %v886 = vadd.f32 %v785, %v870
    %v887 = vadd.f32 %v786, %v871
    %v888 = vadd.f32 %v787, %v872
    %v889 = vadd.f32 %v788, %v873
    %v890 = vlaneseq
    %v891 = vshrl.u32 %v890, 7
    %v892 = vsub.s32 7, %v891
    %v893 = vrot.slane %v731, %v892
    %v894 = vmul.f32 %v683, %v893
    %v895 = vmul.f32 %v684, %v893
    %v896 = vmul.f32 %v685, %v893
    %v897 = vmul.f32 %v686, %v893
    %v898 = vmul.f32 %v687, %v893
    %v899 = vmul.f32 %v688, %v893
    %v900 = vmul.f32 %v689, %v893
    %v901 = vmul.f32 %v690, %v893
    %v902 = vmul.f32 %v715, %v893
    %v903 = vmul.f32 %v716, %v893
    %v904 = vmul.f32 %v717, %v893
    %v905 = vmul.f32 %v718, %v893
    %v906 = vmul.f32 %v719, %v893
    %v907 = vmul.f32 %v720, %v893
    %v908 = vmul.f32 %v721, %v893
    %v909 = vmul.f32 %v722, %v893
    %v910 = vadd.f32 %v874, %v894
    %v911 = vadd.f32 %v875, %v895
    %v912 = vadd.f32 %v876, %v896
    %v913 = vadd.f32 %v877, %v897
    %v914 = vadd.f32 %v878, %v898
    %v915 = vadd.f32 %v879, %v899
    %v916 = vadd.f32 %v880, %v900
    %v917 = vadd.f32 %v881, %v901
    %v918 = vadd.f32 %v882, %v902
    %v919 = vadd.f32 %v883, %v903
    %v920 = vadd.f32 %v884, %v904
    %v921 = vadd.f32 %v885, %v905
    %v922 = vadd.f32 %v886, %v906
    %v923 = vadd.f32 %v887, %v907
    %v924 = vadd.f32 %v888, %v908
    %v925 = vadd.f32 %v889, %v909
    %v926 = vlaneseq
    %v927 = vshrl.u32 %v926, 7
    %v928 = vsub.s32 1, %v927
    %v929 = vrot.slane %v731, %v928
    %v930 = vmul.f32 %v929, 0.0
    %v931 = vmul.f32 %v683, %v929
    %v932 = vmul.f32 %v684, %v929
    %v933 = vmul.f32 %v685, %v929
    %v934 = vmul.f32 %v686, %v929
    %v935 = vmul.f32 %v687, %v929
    %v936 = vmul.f32 %v688, %v929
    %v937 = vmul.f32 %v689, %v929
    %v938 = vmul.f32 %v715, %v929
    %v939 = vmul.f32 %v716, %v929
    %v940 = vmul.f32 %v717, %v929
    %v941 = vmul.f32 %v718, %v929
    %v942 = vmul.f32 %v719, %v929
    %v943 = vmul.f32 %v720, %v929
    %v944 = vmul.f32 %v721, %v929
    %v945 = vadd.f32 %v910, %v930
    %v946 = vadd.f32 %v911, %v931
    %v947 = vadd.f32 %v912, %v932
    %v948 = vadd.f32 %v913, %v933
    %v949 = vadd.f32 %v914, %v934
    %v950 = vadd.f32 %v915, %v935
    %v951 = vadd.f32 %v916, %v936
    %v952 = vadd.f32 %v917, %v937
    %v953 = vadd.f32 %v918, %v930
    %v954 = vadd.f32 %v919, %v938
    %v955 = vadd.f32 %v920, %v939
    %v956 = vadd.f32 %v921, %v940
    %v957 = vadd.f32 %v922, %v941
    %v958 = vadd.f32 %v923, %v942
    %v959 = vadd.f32 %v924, %v943
    %v960 = vadd.f32 %v925, %v944
    %v961 = vlaneseq
    %v962 = vshrl.u32 %v961, 7
    %v963 = vsub.s32 0, %v962
    %v964 = vrot.slane %v732, %v963
    %v965 = vmul.f32 %v691, %v964
    %v966 = vmul.f32 %v692, %v964
    %v967 = vmul.f32 %v693, %v964
    %v968 = vmul.f32 %v694, %v964
    %v969 = vmul.f32 %v695, %v964
    %v970 = vmul.f32 %v696, %v964
    %v971 = vmul.f32 %v697, %v964
    %v972 = vmul.f32 %v698, %v964
    %v973 = vmul.f32 %v723, %v964
    %v974 = vmul.f32 %v724, %v964
    %v975 = vmul.f32 %v725, %v964
    %v976 = vmul.f32 %v726, %v964
    %v977 = vmul.f32 %v727, %v964
    %v978 = vmul.f32 %v728, %v964
    %v979 = vmul.f32 %v729, %v964
    %v980 = vmul.f32 %v730, %v964
    %v981 = vadd.f32 %v945, %v965
    %v982 = vadd.f32 %v946, %v966
    %v983 = vadd.f32 %v947, %v967
    %v984 = vadd.f32 %v948, %v968
    %v985 = vadd.f32 %v949, %v969
    %v986 = vadd.f32 %v950, %v970
    %v987 = vadd.f32 %v951, %v971
    %v988 = vadd.f32 %v952, %v972
    %v989 = vadd.f32 %v953, %v973
    %v990 = vadd.f32 %v954, %v974
    %v991 = vadd.f32 %v955, %v975
    %v992 = vadd.f32 %v956, %v976
    %v993 = vadd.f32 %v957, %v977
    %v994 = vadd.f32 %v958, %v978
    %v995 = vadd.f32 %v959, %v979
    %v996 = vadd.f32 %v960, %v980
    %v1013 = vrot.slane %v691, 7
    %v1014 = vrot.slane %v692, 7
    %v1015 = vrot.slane %v693, 7
    %v1016 = vrot.slane %v694, 7
    %v1017 = vrot.slane %v695, 7
    %v1018 = vrot.slane %v696, 7
    %v1019 = vrot.slane %v697, 7
    %v1020 = vrot.slane %v698, 7
    %v1021 = vrot.slane %v723, 7
    %v1022 = vrot.slane %v724, 7
    %v1023 = vrot.slane %v725, 7
    %v1024 = vrot.slane %v726, 7
    %v1025 = vrot.slane %v727, 7
    %v1026 = vrot.slane %v728, 7
    %v1027 = vrot.slane %v729, 7
    %v1028 = vrot.slane %v730, 7
    %v1045 = vsel %vm837, 0.0, %v1013
    %v1046 = vsel %vm837, 0.0, %v1014
    %v1047 = vsel %vm837, 0.0, %v1015
    %v1048 = vsel %vm837, 0.0, %v1016
    %v1049 = vsel %vm837, 0.0, %v1017
    %v1050 = vsel %vm837, 0.0, %v1018
    %v1051 = vsel %vm837, 0.0, %v1019
    %v1052 = vsel %vm837, 0.0, %v1020
    %v1053 = vsel %vm837, 0.0, %v1021
    %v1054 = vsel %vm837, 0.0, %v1022
    %v1055 = vsel %vm837, 0.0, %v1023
    %v1056 = vsel %vm837, 0.0, %v1024
    %v1057 = vsel %vm837, 0.0, %v1025
    %v1058 = vsel %vm837, 0.0, %v1026
    %v1059 = vsel %vm837, 0.0, %v1027
    %v1060 = vsel %vm837, 0.0, %v1028
    %v1061 = vlaneseq
    %v1062 = vshrl.u32 %v1061, 7
    %v1063 = vsub.s32 6, %v1062
    %v1064 = vrot.slane %v731, %v1063
    %v1065 = vmul.f32 %v1045, %v1064
    %v1066 = vmul.f32 %v1046, %v1064
    %v1067 = vmul.f32 %v1047, %v1064
    %v1068 = vmul.f32 %v1048, %v1064
    %v1069 = vmul.f32 %v1049, %v1064
    %v1070 = vmul.f32 %v1050, %v1064
    %v1071 = vmul.f32 %v1051, %v1064
    %v1072 = vmul.f32 %v1052, %v1064
    %v1073 = vmul.f32 %v1053, %v1064
    %v1074 = vmul.f32 %v1054, %v1064
    %v1075 = vmul.f32 %v1055, %v1064
    %v1076 = vmul.f32 %v1056, %v1064
    %v1077 = vmul.f32 %v1057, %v1064
    %v1078 = vmul.f32 %v1058, %v1064
    %v1079 = vmul.f32 %v1059, %v1064
    %v1080 = vmul.f32 %v1060, %v1064
    %v1081 = vadd.f32 %v981, %v1065
    %v1082 = vadd.f32 %v982, %v1066
    %v1083 = vadd.f32 %v983, %v1067
    %v1084 = vadd.f32 %v984, %v1068
    %v1085 = vadd.f32 %v985, %v1069
    %v1086 = vadd.f32 %v986, %v1070
    %v1087 = vadd.f32 %v987, %v1071
    %v1088 = vadd.f32 %v988, %v1072
    %v1089 = vadd.f32 %v989, %v1073
    %v1090 = vadd.f32 %v990, %v1074
    %v1091 = vadd.f32 %v991, %v1075
    %v1092 = vadd.f32 %v992, %v1076
    %v1093 = vadd.f32 %v993, %v1077
    %v1094 = vadd.f32 %v994, %v1078
    %v1095 = vadd.f32 %v995, %v1079
    %v1096 = vadd.f32 %v996, %v1080
    %v1097 = vlaneseq
    %v1098 = vshrl.u32 %v1097, 7
    %v1099 = vsub.s32 2, %v1098
    %v1100 = vrot.slane %v731, %v1099
    %v1101 = vmul.f32 %v1100, 0.0
    %v1102 = vmul.f32 %v691, %v1100
    %v1103 = vmul.f32 %v692, %v1100
    %v1104 = vmul.f32 %v693, %v1100
    %v1105 = vmul.f32 %v694, %v1100
    %v1106 = vmul.f32 %v695, %v1100
    %v1107 = vmul.f32 %v696, %v1100
    %v1108 = vmul.f32 %v697, %v1100
    %v1109 = vmul.f32 %v723, %v1100
    %v1110 = vmul.f32 %v724, %v1100
    %v1111 = vmul.f32 %v725, %v1100
    %v1112 = vmul.f32 %v726, %v1100
    %v1113 = vmul.f32 %v727, %v1100
    %v1114 = vmul.f32 %v728, %v1100
    %v1115 = vmul.f32 %v729, %v1100
    %v1116 = vadd.f32 %v1081, %v1101
    %v1117 = vadd.f32 %v1082, %v1102
    %v1118 = vadd.f32 %v1083, %v1103
    %v1119 = vadd.f32 %v1084, %v1104
    %v1120 = vadd.f32 %v1085, %v1105
    %v1121 = vadd.f32 %v1086, %v1106
    %v1122 = vadd.f32 %v1087, %v1107
    %v1123 = vadd.f32 %v1088, %v1108
    %v1124 = vadd.f32 %v1089, %v1101
    %v1125 = vadd.f32 %v1090, %v1109
    %v1126 = vadd.f32 %v1091, %v1110
    %v1127 = vadd.f32 %v1092, %v1111
    %v1128 = vadd.f32 %v1093, %v1112
    %v1129 = vadd.f32 %v1094, %v1113
    %v1130 = vadd.f32 %v1095, %v1114
    %v1131 = vadd.f32 %v1096, %v1115
    %v1132 = vlaneseq
    %v1133 = vshrl.u32 %v1132, 7
    %v1134 = vsub.s32 0, %v1133
    %v1135 = vrot.slane %v731, %v1134
    %v1136 = vmul.f32 %v1135, 0.0
    %v1137 = vmul.f32 %v1045, %v1135
    %v1138 = vmul.f32 %v1046, %v1135
    %v1139 = vmul.f32 %v1047, %v1135
    %v1140 = vmul.f32 %v1048, %v1135
    %v1141 = vmul.f32 %v1049, %v1135
    %v1142 = vmul.f32 %v1050, %v1135
    %v1143 = vmul.f32 %v1051, %v1135
    %v1144 = vmul.f32 %v1053, %v1135
    %v1145 = vmul.f32 %v1054, %v1135
    %v1146 = vmul.f32 %v1055, %v1135
    %v1147 = vmul.f32 %v1056, %v1135
    %v1148 = vmul.f32 %v1057, %v1135
    %v1149 = vmul.f32 %v1058, %v1135
    %v1150 = vmul.f32 %v1059, %v1135
    %v1151 = vadd.f32 %v1116, %v1136
    %v1152 = vadd.f32 %v1117, %v1137
    %v1153 = vadd.f32 %v1118, %v1138
    %v1154 = vadd.f32 %v1119, %v1139
    %v1155 = vadd.f32 %v1120, %v1140
    %v1156 = vadd.f32 %v1121, %v1141
    %v1157 = vadd.f32 %v1122, %v1142
    %v1158 = vadd.f32 %v1123, %v1143
    %v1159 = vadd.f32 %v1124, %v1136
    %v1160 = vadd.f32 %v1125, %v1144
    %v1161 = vadd.f32 %v1126, %v1145
    %v1162 = vadd.f32 %v1127, %v1146
    %v1163 = vadd.f32 %v1128, %v1147
    %v1164 = vadd.f32 %v1129, %v1148
    %v1165 = vadd.f32 %v1130, %v1149
    %v1166 = vadd.f32 %v1131, %v1150
    %v1167 = vld [vmem:[%s1 + $0x49] sm:$0x1]
    %v1168 = vlaneseq
    %v1169 = vshrl.u32 %v1168, 7
    %v1170 = vsub.s32 0, %v1169
    %v1171 = vrot.slane %v1167, %v1170
    %v1172 = vadd.f32 %v1151, %v1171
    %v1173 = vadd.f32 %v1152, %v1171
    %v1174 = vadd.f32 %v1153, %v1171
    %v1175 = vadd.f32 %v1154, %v1171
    %v1176 = vadd.f32 %v1155, %v1171
    %v1177 = vadd.f32 %v1156, %v1171
    %v1178 = vadd.f32 %v1157, %v1171
    %v1179 = vadd.f32 %v1158, %v1171
    %v1180 = vadd.f32 %v1159, %v1171
    %v1181 = vadd.f32 %v1160, %v1171
    %v1182 = vadd.f32 %v1161, %v1171
    %v1183 = vadd.f32 %v1162, %v1171
    %v1184 = vadd.f32 %v1163, %v1171
    %v1185 = vadd.f32 %v1164, %v1171
    %v1186 = vadd.f32 %v1165, %v1171
    %v1187 = vadd.f32 %v1166, %v1171
    %v1188 = vmax.f32 %v1172, 0.0
    %v1189 = vmax.f32 %v1173, 0.0
    %v1190 = vmax.f32 %v1174, 0.0
    %v1191 = vmax.f32 %v1175, 0.0
    %v1192 = vmax.f32 %v1176, 0.0
    %v1193 = vmax.f32 %v1177, 0.0
    %v1194 = vmax.f32 %v1178, 0.0
    %v1195 = vmax.f32 %v1179, 0.0
    %v1196 = vmax.f32 %v1180, 0.0
    %v1197 = vmax.f32 %v1181, 0.0
    %v1198 = vmax.f32 %v1182, 0.0
    %v1199 = vmax.f32 %v1183, 0.0
    %v1200 = vmax.f32 %v1184, 0.0
    %v1201 = vmax.f32 %v1185, 0.0
    %v1202 = vmax.f32 %v1186, 0.0
    %v1203 = vmax.f32 %v1187, 0.0
    %v1204 = vld [vmem:[%s1 + $0x18] sm:$0xff]
    %v1205 = vld [vmem:[%s1 + $0x4a] sm:$0x1]
    %v1206 = vlaneseq
    %v1207 = vshrl.u32 %v1206, 7
    %v1208 = vsub.s32 0, %v1207
    %v1209 = vrot.slane %v1205, %v1208
    %vm1210 = vcmask 64512
    %v1212 = vsel %vm1210, %v1188, 0
    %v1215 = vsel %vm1210, %v1189, 0
    %v1218 = vsel %vm1210, %v1190, 0
    %v1221 = vsel %vm1210, %v1191, 0
    %v1224 = vsel %vm1210, %v1192, 0
    %v1227 = vsel %vm1210, %v1193, 0
    %v1230 = vsel %vm1210, %v1194, 0
    %v1233 = vsel %vm1210, %v1195, 0
    %v1236 = vsel %vm1210, %v1196, 0
    %v1239 = vsel %vm1210, %v1197, 0
    %v1242 = vsel %vm1210, %v1198, 0
    %v1245 = vsel %vm1210, %v1199, 0
    %v1248 = vsel %vm1210, %v1200, 0
    %v1251 = vsel %vm1210, %v1201, 0
    %v1254 = vsel %vm1210, %v1202, 0
    %v1257 = vsel %vm1210, %v1203, 0
    %1259 = vmatprep.subr.mxu0 0.0
    %1260 = vmatpush1.msra.mxu0 0.0
    %1261 = vmatprep.subr.mxu0 0.0
    %1262 = vmatpush1.msra.mxu0 0.0
    %1263 = vmatprep.subr.mxu0 0.0
    %1264 = vmatpush1.msra.mxu0 0.0
    %1265 = vmatprep.subr.mxu0 0.0
    %1266 = vmatpush1.msra.mxu0 0.0
    %1267 = vmatprep.subr.mxu0 0.0
    %1268 = vmatpush1.msra.mxu0 0.0
    %1269 = vmatprep.subr.mxu0 0.0
    %1270 = vmatpush1.msra.mxu0 0.0
    %1271 = vmatprep.subr.mxu0 0.0
    %1272 = vmatpush1.msra.mxu0 0.0
    %1273 = vmatprep.subr.mxu0 0.0
    %1274 = vmatpush1.msra.mxu0 0.0
    %1275 = vmatprep.subr.mxu0 0.0
    %1276 = vmatpush1.msra.mxu0 0.0
    %1277 = vmatprep.subr.mxu0 0.0
    %1278 = vmatpush1.msra.mxu0 0.0
    %1279 = vmatprep.subr.mxu0 0.0
    %1280 = vmatpush1.msra.mxu0 0.0
    %1281 = vmatprep.subr.mxu0 0.0
    %1282 = vmatpush1.msra.mxu0 0.0
    %1283 = vmatprep.subr.mxu0 0.0
    %1284 = vmatpush1.msra.mxu0 0.0
    %1285 = vmatprep.subr.mxu0 0.0
    %1286 = vmatpush1.msra.mxu0 0.0
    %1287 = vmatprep.subr.mxu0 0.0
    %1288 = vmatpush1.msra.mxu0 0.0
    %1289 = vmatprep.subr.mxu0 0.0
    %1290 = vmatpush1.msra.mxu0 %v1204
    %1291 = vmatprep.subr.mxu0 0.0
    %1292 = vmatpush2.msra.mxu0 0.0
    %1293 = vmatprep.subr.mxu0 0.0
    %1294 = vmatpush2.msra.mxu0 0.0
    %1295 = vmatprep.subr.mxu0 0.0
    %1296 = vmatpush2.msra.mxu0 0.0
    %1297 = vmatprep.subr.mxu0 0.0
    %1298 = vmatpush2.msra.mxu0 0.0
    %1299 = vmatprep.subr.mxu0 0.0
    %1300 = vmatpush2.msra.mxu0 0.0
    %1301 = vmatprep.subr.mxu0 0.0
    %1302 = vmatpush2.msra.mxu0 0.0
    %1303 = vmatprep.subr.mxu0 0.0
    %1304 = vmatpush2.msra.mxu0 0.0
    %1305 = vmatprep.subr.mxu0 0.0
    %1306 = vmatpush2.msra.mxu0 0.0
    %1307 = vmatprep.subr.mxu0 0.0
    %1308 = vmatpush2.msra.mxu0 0.0
    %1309 = vmatprep.subr.mxu0 0.0
    %1310 = vmatpush2.msra.mxu0 0.0
    %1311 = vmatprep.subr.mxu0 0.0
    %1312 = vmatpush2.msra.mxu0 0.0
    %1313 = vmatprep.subr.mxu0 0.0
    %1314 = vmatpush2.msra.mxu0 0.0
    %1315 = vmatprep.subr.mxu0 0.0
    %1316 = vmatpush2.msra.mxu0 0.0
    %1317 = vmatprep.subr.mxu0 0.0
    %1318 = vmatpush2.msra.mxu0 0.0
    %1319 = vmatprep.subr.mxu0 0.0
    %1320 = vmatpush2.msra.mxu0 0.0
    %1321 = vmatprep.subr.mxu0 0.0
    %1322 = vmatpush2.msra.mxu0 0.0
    %1323 = vmatprep.mubr.f32.mxu0 0.0
    %1324 = vmatmul.mubr.f32.gmra.mxu0 %v1212
    %v1325 = vpop.f32.mrf.mxu0
    %v1326 = vadd.f32 %v1209, %v1325
    %v1327 = vpop.f32.mrf.mxu0
    %1328 = vmatprep.mubr.f32.mxu0 0.0
    %1329 = vmatmul.mubr.f32.gmra.mxu0 %v1215
    %v1330 = vpop.f32.mrf.mxu0
    %v1331 = vadd.f32 %v1209, %v1330
    %v1332 = vpop.f32.mrf.mxu0
    %1333 = vmatprep.mubr.f32.mxu0 0.0
    %1334 = vmatmul.mubr.f32.gmra.mxu0 %v1218
    %v1335 = vpop.f32.mrf.mxu0
    %v1336 = vadd.f32 %v1209, %v1335
    %v1337 = vpop.f32.mrf.mxu0
    %1338 = vmatprep.mubr.f32.mxu0 0.0
    %1339 = vmatmul.mubr.f32.gmra.mxu0 %v1221
    %v1340 = vpop.f32.mrf.mxu0
    %v1341 = vadd.f32 %v1209, %v1340
    %v1342 = vpop.f32.mrf.mxu0
    %1343 = vmatprep.mubr.f32.mxu0 0.0
    %1344 = vmatmul.mubr.f32.gmra.mxu0 %v1224
    %v1345 = vpop.f32.mrf.mxu0
    %v1346 = vadd.f32 %v1209, %v1345
    %v1347 = vpop.f32.mrf.mxu0
    %1348 = vmatprep.mubr.f32.mxu0 0.0
    %1349 = vmatmul.mubr.f32.gmra.mxu0 %v1227
    %v1350 = vpop.f32.mrf.mxu0
    %v1351 = vadd.f32 %v1209, %v1350
    %v1352 = vpop.f32.mrf.mxu0
    %1353 = vmatprep.mubr.f32.mxu0 0.0
    %1354 = vmatmul.mubr.f32.gmra.mxu0 %v1230
    %v1355 = vpop.f32.mrf.mxu0
    %v1356 = vadd.f32 %v1209, %v1355
    %v1357 = vpop.f32.mrf.mxu0
    %1358 = vmatprep.mubr.f32.mxu0 0.0
    %1359 = vmatmul.mubr.f32.gmra.mxu0 %v1233
    %v1360 = vpop.f32.mrf.mxu0
    %v1361 = vadd.f32 %v1209, %v1360
    %v1362 = vpop.f32.mrf.mxu0
    %1363 = vmatprep.mubr.f32.mxu0 0.0
    %1364 = vmatmul.mubr.f32.gmra.mxu0 %v1236
    %v1365 = vpop.f32.mrf.mxu0
    %v1366 = vadd.f32 %v1209, %v1365
    %v1367 = vpop.f32.mrf.mxu0
    %1368 = vmatprep.mubr.f32.mxu0 0.0
    %1369 = vmatmul.mubr.f32.gmra.mxu0 %v1239
    %v1370 = vpop.f32.mrf.mxu0
    %v1371 = vadd.f32 %v1209, %v1370
    %v1372 = vpop.f32.mrf.mxu0
    %1373 = vmatprep.mubr.f32.mxu0 0.0
    %1374 = vmatmul.mubr.f32.gmra.mxu0 %v1242
    %v1375 = vpop.f32.mrf.mxu0
    %v1376 = vadd.f32 %v1209, %v1375
    %v1377 = vpop.f32.mrf.mxu0
    %1378 = vmatprep.mubr.f32.mxu0 0.0
    %1379 = vmatmul.mubr.f32.gmra.mxu0 %v1245
    %v1380 = vpop.f32.mrf.mxu0
    %v1381 = vadd.f32 %v1209, %v1380
    %v1382 = vpop.f32.mrf.mxu0
    %1383 = vmatprep.mubr.f32.mxu0 0.0
    %1384 = vmatmul.mubr.f32.gmra.mxu0 %v1248
    %v1385 = vpop.f32.mrf.mxu0
    %v1386 = vadd.f32 %v1209, %v1385
    %v1387 = vpop.f32.mrf.mxu0
    %1388 = vmatprep.mubr.f32.mxu0 0.0
    %1389 = vmatmul.mubr.f32.gmra.mxu0 %v1251
    %v1390 = vpop.f32.mrf.mxu0
    %v1391 = vadd.f32 %v1209, %v1390
    %v1392 = vpop.f32.mrf.mxu0
    %1393 = vmatprep.mubr.f32.mxu0 0.0
    %1394 = vmatmul.mubr.f32.gmra.mxu0 %v1254
    %v1395 = vpop.f32.mrf.mxu0
    %v1396 = vadd.f32 %v1209, %v1395
    %v1397 = vpop.f32.mrf.mxu0
    %1398 = vmatprep.mubr.f32.mxu0 0.0
    %1399 = vmatmul.mubr.f32.gmra.mxu0 %v1257
    %v1400 = vpop.f32.mrf.mxu0
    %v1401 = vadd.f32 %v1209, %v1400
    %v1402 = vpop.f32.mrf.mxu0
    %1403 = vdwg.mxu0
    %v1404 = vmax.f32 %v1326, 0.0
    %v1405 = vmax.f32 %v1331, 0.0
    %v1406 = vmax.f32 %v1336, 0.0
    %v1407 = vmax.f32 %v1341, 0.0
    %v1408 = vmax.f32 %v1346, 0.0
    %v1409 = vmax.f32 %v1351, 0.0
    %v1410 = vmax.f32 %v1356, 0.0
    %v1411 = vmax.f32 %v1361, 0.0
    %v1412 = vmax.f32 %v1366, 0.0
    %v1413 = vmax.f32 %v1371, 0.0
    %v1414 = vmax.f32 %v1376, 0.0
    %v1415 = vmax.f32 %v1381, 0.0
    %v1416 = vmax.f32 %v1386, 0.0
    %v1417 = vmax.f32 %v1391, 0.0
    %v1418 = vmax.f32 %v1396, 0.0
    %v1419 = vmax.f32 %v1401, 0.0
    %vm1420 = vcmask 130048
    %v1421 = vsel %vm1420, %v1404, 0.0
    %v1422 = vsel %vm1420, %v1405, 0.0
    %v1423 = vadd.f32 %v1421, %v1422
    %v1424 = vsel %vm1420, %v1406, 0.0
    %v1425 = vadd.f32 %v1423, %v1424
    %v1426 = vsel %vm1420, %v1407, 0.0
    %v1427 = vadd.f32 %v1425, %v1426
    %v1428 = vsel %vm1420, %v1408, 0.0
    %v1429 = vadd.f32 %v1427, %v1428
    %v1430 = vsel %vm1420, %v1409, 0.0
    %v1431 = vadd.f32 %v1429, %v1430
    %v1432 = vsel %vm1420, %v1410, 0.0
    %v1433 = vadd.f32 %v1431, %v1432
    %v1434 = vsel %vm1420, %v1411, 0.0
    %v1435 = vadd.f32 %v1433, %v1434
    %v1436 = vrot.slane %v1435, 4
    %v1437 = vadd.f32 %v1435, %v1436
    %v1438 = vrot.slane %v1437, 2
    %v1439 = vadd.f32 %v1437, %v1438
    %v1440 = vrot.slane %v1439, 1
    %v1441 = vadd.f32 %v1439, %v1440
    %v1442 = vsel %vm1420, %v1412, 0.0
    %v1443 = vsel %vm1420, %v1413, 0.0
    %v1444 = vadd.f32 %v1442, %v1443
    %v1445 = vsel %vm1420, %v1414, 0.0
    %v1446 = vadd.f32 %v1444, %v1445
    %v1447 = vsel %vm1420, %v1415, 0.0
    %v1448 = vadd.f32 %v1446, %v1447
    %v1449 = vsel %vm1420, %v1416, 0.0
    %v1450 = vadd.f32 %v1448, %v1449
    %v1451 = vsel %vm1420, %v1417, 0.0
    %v1452 = vadd.f32 %v1450, %v1451
    %v1453 = vsel %vm1420, %v1418, 0.0
    %v1454 = vadd.f32 %v1452, %v1453
    %v1455 = vsel %vm1420, %v1419, 0.0
    %v1456 = vadd.f32 %v1454, %v1455
    %v1457 = vrot.slane %v1456, 4
    %v1458 = vadd.f32 %v1456, %v1457
    %v1459 = vrot.slane %v1458, 2
    %v1460 = vadd.f32 %v1458, %v1459
    %v1461 = vrot.slane %v1460, 1
    %v1462 = vadd.f32 %v1460, %v1461
    %v1463 = vrcp.pop 64.0
    %v1464 = vmul.f32 %v1441, %v1463
    %v1465 = vmul.f32 %v1462, %v1463
    %v1466 = vld [vmem:[%s1 + $0x20] sm:$0xff]
    %v1467 = vld [vmem:[%s1 + $0x28] sm:$0xff]
    %v1468 = vld [vmem:[%s1 + $0x4b] sm:$0x1]
    %v1469 = vlaneseq
    %v1470 = vshrl.u32 %v1469, 7
    %v1471 = vsub.s32 0, %v1470
    %v1472 = vrot.slane %v1468, %v1471
    %vm1475 = vcmask 1041409
    %v1476 = vsel %vm1475, %v1465, %v1464
    %v1477 = vsel %vm1420, %v1476, 0
    %1479 = vmatprep.subr.mxu0 0.0
    %1480 = vmatpush1.msra.mxu0 0.0
    %1481 = vmatprep.subr.mxu0 0.0
    %1482 = vmatpush1.msra.mxu0 0.0
    %1483 = vmatprep.subr.mxu0 0.0
    %1484 = vmatpush1.msra.mxu0 0.0
    %1485 = vmatprep.subr.mxu0 0.0
    %1486 = vmatpush1.msra.mxu0 0.0
    %1487 = vmatprep.subr.mxu0 0.0
    %1488 = vmatpush1.msra.mxu0 0.0
    %1489 = vmatprep.subr.mxu0 0.0
    %1490 = vmatpush1.msra.mxu0 0.0
    %1491 = vmatprep.subr.mxu0 0.0
    %1492 = vmatpush1.msra.mxu0 0.0
    %1493 = vmatprep.subr.mxu0 0.0
    %1494 = vmatpush1.msra.mxu0 0.0
    %1495 = vmatprep.subr.mxu0 0.0
    %1496 = vmatpush1.msra.mxu0 0.0
    %1497 = vmatprep.subr.mxu0 0.0
    %1498 = vmatpush1.msra.mxu0 0.0
    %1499 = vmatprep.subr.mxu0 0.0
    %1500 = vmatpush1.msra.mxu0 0.0
    %1501 = vmatprep.subr.mxu0 0.0
    %1502 = vmatpush1.msra.mxu0 0.0
    %1503 = vmatprep.subr.mxu0 0.0
    %1504 = vmatpush1.msra.mxu0 0.0
    %1505 = vmatprep.subr.mxu0 0.0
    %1506 = vmatpush1.msra.mxu0 0.0
    %1507 = vmatprep.subr.mxu0 0.0
    %1508 = vmatpush1.msra.mxu0 %v1467
    %1509 = vmatprep.subr.mxu0 0.0
    %1510 = vmatpush1.msra.mxu0 %v1466
    %1511 = vmatprep.subr.mxu0 0.0
    %1512 = vmatpush2.msra.mxu0 0.0
    %1513 = vmatprep.subr.mxu0 0.0
    %1514 = vmatpush2.msra.mxu0 0.0
    %1515 = vmatprep.subr.mxu0 0.0
    %1516 = vmatpush2.msra.mxu0 0.0
    %1517 = vmatprep.subr.mxu0 0.0
    %1518 = vmatpush2.msra.mxu0 0.0
    %1519 = vmatprep.subr.mxu0 0.0
    %1520 = vmatpush2.msra.mxu0 0.0
    %1521 = vmatprep.subr.mxu0 0.0
    %1522 = vmatpush2.msra.mxu0 0.0
    %1523 = vmatprep.subr.mxu0 0.0
    %1524 = vmatpush2.msra.mxu0 0.0
    %1525 = vmatprep.subr.mxu0 0.0
    %1526 = vmatpush2.msra.mxu0 0.0
    %1527 = vmatprep.subr.mxu0 0.0
    %1528 = vmatpush2.msra.mxu0 0.0
    %1529 = vmatprep.subr.mxu0 0.0
    %1530 = vmatpush2.msra.mxu0 0.0
    %1531 = vmatprep.subr.mxu0 0.0
    %1532 = vmatpush2.msra.mxu0 0.0
    %1533 = vmatprep.subr.mxu0 0.0
    %1534 = vmatpush2.msra.mxu0 0.0
    %1535 = vmatprep.subr.mxu0 0.0
    %1536 = vmatpush2.msra.mxu0 0.0
    %1537 = vmatprep.subr.mxu0 0.0
    %1538 = vmatpush2.msra.mxu0 0.0
    %1539 = vmatprep.subr.mxu0 0.0
    %1540 = vmatpush2.msra.mxu0 0.0
    %1541 = vmatprep.subr.mxu0 0.0
    %1542 = vmatpush2.msra.mxu0 0.0
    %1543 = vmatprep.mubr.f32.mxu0 0.0
    %1544 = vmatmul.mubr.f32.gmra.mxu0 %v1477
    %v1545 = vpop.f32.mrf.mxu0
    %v1546 = vadd.f32 %v1472, %v1545
    %v1547 = vpop.f32.mrf.mxu0
    %1548 = vdwg.mxu0
    %v1549 = vmax.f32 %v1546, 0.0
    %v1550 = vld [vmem:[%s1 + $0x30] sm:$0xf]
    %v1551 = vld [vmem:[%s1 + $0x4c] sm:$0x1]
    %v1552 = vlaneseq
    %v1553 = vshrl.u32 %v1552, 7
    %v1554 = vsub.s32 0, %v1553
    %v1555 = vrot.slane %v1551, %v1554
    %v1557 = vsel %vm85, %v1549, 0
    %v1560 = vsel %vm278, %v1550, 0
    %1562 = vmatprep.subr.mxu0 0.0
    %1563 = vmatpush1.msra.mxu0 0.0
    %1564 = vmatprep.subr.mxu0 0.0
    %1565 = vmatpush1.msra.mxu0 0.0
    %1566 = vmatprep.subr.mxu0 0.0
    %1567 = vmatpush1.msra.mxu0 0.0
    %1568 = vmatprep.subr.mxu0 0.0
    %1569 = vmatpush1.msra.mxu0 0.0
    %1570 = vmatprep.subr.mxu0 0.0
    %1571 = vmatpush1.msra.mxu0 0.0
    %1572 = vmatprep.subr.mxu0 0.0
    %1573 = vmatpush1.msra.mxu0 0.0
    %1574 = vmatprep.subr.mxu0 0.0
    %1575 = vmatpush1.msra.mxu0 0.0
    %1576 = vmatprep.subr.mxu0 0.0
    %1577 = vmatpush1.msra.mxu0 0.0
    %1578 = vmatprep.subr.mxu0 0.0
    %1579 = vmatpush1.msra.mxu0 0.0
    %1580 = vmatprep.subr.mxu0 0.0
    %1581 = vmatpush1.msra.mxu0 0.0
    %1582 = vmatprep.subr.mxu0 0.0
    %1583 = vmatpush1.msra.mxu0 0.0
    %1584 = vmatprep.subr.mxu0 0.0
    %1585 = vmatpush1.msra.mxu0 0.0
    %1586 = vmatprep.subr.mxu0 0.0
    %1587 = vmatpush1.msra.mxu0 0.0
    %1588 = vmatprep.subr.mxu0 0.0
    %1589 = vmatpush1.msra.mxu0 0.0
    %1590 = vmatprep.subr.mxu0 0.0
    %1591 = vmatpush1.msra.mxu0 0.0
    %1592 = vmatprep.subr.mxu0 0.0
    %1593 = vmatpush1.msra.mxu0 %v1560
    %1594 = vmatprep.subr.mxu0 0.0
    %1595 = vmatpush2.msra.mxu0 0.0
    %1596 = vmatprep.subr.mxu0 0.0
    %1597 = vmatpush2.msra.mxu0 0.0
    %1598 = vmatprep.subr.mxu0 0.0
    %1599 = vmatpush2.msra.mxu0 0.0
    %1600 = vmatprep.subr.mxu0 0.0
    %1601 = vmatpush2.msra.mxu0 0.0
    %1602 = vmatprep.subr.mxu0 0.0
    %1603 = vmatpush2.msra.mxu0 0.0
    %1604 = vmatprep.subr.mxu0 0.0
    %1605 = vmatpush2.msra.mxu0 0.0
    %1606 = vmatprep.subr.mxu0 0.0
    %1607 = vmatpush2.msra.mxu0 0.0
    %1608 = vmatprep.subr.mxu0 0.0
    %1609 = vmatpush2.msra.mxu0 0.0
    %1610 = vmatprep.subr.mxu0 0.0
    %1611 = vmatpush2.msra.mxu0 0.0
    %1612 = vmatprep.subr.mxu0 0.0
    %1613 = vmatpush2.msra.mxu0 0.0
    %1614 = vmatprep.subr.mxu0 0.0
    %1615 = vmatpush2.msra.mxu0 0.0
    %1616 = vmatprep.subr.mxu0 0.0
    %1617 = vmatpush2.msra.mxu0 0.0
    %1618 = vmatprep.subr.mxu0 0.0
    %1619 = vmatpush2.msra.mxu0 0.0
    %1620 = vmatprep.subr.mxu0 0.0
    %1621 = vmatpush2.msra.mxu0 0.0
    %1622 = vmatprep.subr.mxu0 0.0
    %1623 = vmatpush2.msra.mxu0 0.0
    %1624 = vmatprep.subr.mxu0 0.0
    %1625 = vmatpush2.msra.mxu0 0.0
    %1626 = vmatprep.mubr.f32.mxu0 0.0
    %1627 = vmatmul.mubr.f32.gmra.mxu0 %v1557
    %v1628 = vpop.f32.mrf.mxu0
    %v1629 = vadd.f32 %v1555, %v1628
    %v1630 = vpop.f32.mrf.mxu0
    %1631 = vdwg.mxu0
    %v1632 = vsub.f32 0.0, %v1629
    %v1633 = vmul.f32 %v1632, 1.442695
    %v1634 = vpow.pop %v1633
    %v1635 = vadd.f32 %v1634, 1.0
    %v1636 = vrcp.pop %v1635
    %v1637 = vmul.f32 1.0, %v1636
    %v1640 = vunpack.c.l.s4 1966171168
    %v1641 = vunpack.c.0.s8 %v1640
    %v1642 = vlaneseq
    %v1643 = vshrl.u32 %v1642, 7
    %v1644 = vsub.s32 %v1641, %v1643
    %v1645 = vrot.slane %v1637, %v1644
    %v1646 = vcombine.high %v1645, %v1645
    %v1648 = vunpack.c.l.s4 1966171168
    %v1649 = vunpack.c.0.s8 %v1648
    %v1650 = vlaneseq
    %v1651 = vshrl.u32 %v1650, 7
    %v1652 = vsub.s32 %v1649, %v1651
    %v1653 = vrot.slane %v1645, %v1652
    %v1655 = vunpack.c.l.s4 1966171168
    %v1656 = vunpack.c.0.s8 %v1655
    %v1657 = vlaneseq
    %v1658 = vshrl.u32 %v1657, 7
    %v1659 = vsub.s32 %v1656, %v1658
    %v1660 = vrot.slane %v1646, %v1659
    %v1661 = vlaneseq
    %v1662 = vshrl.u32 %v1661, 7
    %v1663 = vsub.s32 0, %v1662
    %v1664 = vrot.slane %v1653, %v1663
    %v1665 = vlaneseq
    %v1666 = vshrl.u32 %v1665, 7
    %v1667 = vsub.s32 0, %v1666
    %v1668 = vrot.slane %v1660, %v1667
    %v1671 = vmul.f32 %v1404, %v1664
    %v1672 = vmul.f32 %v1405, %v1664
    %v1673 = vmul.f32 %v1406, %v1664
    %v1674 = vmul.f32 %v1407, %v1664
    %v1675 = vmul.f32 %v1408, %v1664
    %v1676 = vmul.f32 %v1409, %v1664
    %v1677 = vmul.f32 %v1410, %v1664
    %v1678 = vmul.f32 %v1411, %v1664
    %v1679 = vmul.f32 %v1412, %v1668
    %v1680 = vmul.f32 %v1413, %v1668
    %v1681 = vmul.f32 %v1414, %v1668
    %v1682 = vmul.f32 %v1415, %v1668
    %v1683 = vmul.f32 %v1416, %v1668
    %v1684 = vmul.f32 %v1417, %v1668
    %v1685 = vmul.f32 %v1418, %v1668
    %v1686 = vmul.f32 %v1419, %v1668
    %v1687 = vld [vmem:[%s1 + $0x38] sm:$0xff]
    %v1688 = vld [vmem:[%s1 + $0x40] sm:$0xff]
    %v1689 = vld [vmem:[%s1 + $0x4d] sm:$0x1]
    %v1690 = vlaneseq
    %v1691 = vshrl.u32 %v1690, 7
    %v1692 = vsub.s32 0, %v1691
    %v1693 = vrot.slane %v1689, %v1692
    %v1695 = vsel %vm1420, %v1671, 0
    %v1698 = vsel %vm1420, %v1672, 0
    %v1701 = vsel %vm1420, %v1673, 0
    %v1704 = vsel %vm1420, %v1674, 0
    %v1707 = vsel %vm1420, %v1675, 0
    %v1710 = vsel %vm1420, %v1676, 0
    %v1713 = vsel %vm1420, %v1677, 0
    %v1716 = vsel %vm1420, %v1678, 0
    %v1719 = vsel %vm1420, %v1679, 0
    %v1722 = vsel %vm1420, %v1680, 0
    %v1725 = vsel %vm1420, %v1681, 0
    %v1728 = vsel %vm1420, %v1682, 0
    %v1731 = vsel %vm1420, %v1683, 0
    %v1734 = vsel %vm1420, %v1684, 0
    %v1737 = vsel %vm1420, %v1685, 0
    %v1740 = vsel %vm1420, %v1686, 0
    %1742 = vmatprep.subr.mxu0 0.0
    %1743 = vmatpush1.msra.mxu0 0.0
    %1744 = vmatprep.subr.mxu0 0.0
    %1745 = vmatpush1.msra.mxu0 0.0
    %1746 = vmatprep.subr.mxu0 0.0
    %1747 = vmatpush1.msra.mxu0 0.0
    %1748 = vmatprep.subr.mxu0 0.0
    %1749 = vmatpush1.msra.mxu0 0.0
    %1750 = vmatprep.subr.mxu0 0.0
    %1751 = vmatpush1.msra.mxu0 0.0
    %1752 = vmatprep.subr.mxu0 0.0
    %1753 = vmatpush1.msra.mxu0 0.0
    %1754 = vmatprep.subr.mxu0 0.0
    %1755 = vmatpush1.msra.mxu0 0.0
    %1756 = vmatprep.subr.mxu0 0.0
    %1757 = vmatpush1.msra.mxu0 0.0
    %1758 = vmatprep.subr.mxu0 0.0
    %1759 = vmatpush1.msra.mxu0 0.0
    %1760 = vmatprep.subr.mxu0 0.0
    %1761 = vmatpush1.msra.mxu0 0.0
    %1762 = vmatprep.subr.mxu0 0.0
    %1763 = vmatpush1.msra.mxu0 0.0
    %1764 = vmatprep.subr.mxu0 0.0
    %1765 = vmatpush1.msra.mxu0 0.0
    %1766 = vmatprep.subr.mxu0 0.0
    %1767 = vmatpush1.msra.mxu0 0.0
    %1768 = vmatprep.subr.mxu0 0.0
    %1769 = vmatpush1.msra.mxu0 0.0
    %1770 = vmatprep.subr.mxu0 0.0
    %1771 = vmatpush1.msra.mxu0 %v1688
    %1772 = vmatprep.subr.mxu0 0.0
    %1773 = vmatpush1.msra.mxu0 %v1687
    %1774 = vmatprep.subr.mxu0 0.0
    %1775 = vmatpush2.msra.mxu0 0.0
    %1776 = vmatprep.subr.mxu0 0.0
    %1777 = vmatpush2.msra.mxu0 0.0
    %1778 = vmatprep.subr.mxu0 0.0
    %1779 = vmatpush2.msra.mxu0 0.0
    %1780 = vmatprep.subr.mxu0 0.0
    %1781 = vmatpush2.msra.mxu0 0.0
    %1782 = vmatprep.subr.mxu0 0.0
    %1783 = vmatpush2.msra.mxu0 0.0
    %1784 = vmatprep.subr.mxu0 0.0
    %1785 = vmatpush2.msra.mxu0 0.0
    %1786 = vmatprep.subr.mxu0 0.0
    %1787 = vmatpush2.msra.mxu0 0.0
    %1788 = vmatprep.subr.mxu0 0.0
    %1789 = vmatpush2.msra.mxu0 0.0
    %1790 = vmatprep.subr.mxu0 0.0
    %1791 = vmatpush2.msra.mxu0 0.0
    %1792 = vmatprep.subr.mxu0 0.0
    %1793 = vmatpush2.msra.mxu0 0.0
    %1794 = vmatprep.subr.mxu0 0.0
    %1795 = vmatpush2.msra.mxu0 0.0
    %1796 = vmatprep.subr.mxu0 0.0
    %1797 = vmatpush2.msra.mxu0 0.0
    %1798 = vmatprep.subr.mxu0 0.0
    %1799 = vmatpush2.msra.mxu0 0.0
    %1800 = vmatprep.subr.mxu0 0.0
    %1801 = vmatpush2.msra.mxu0 0.0
    %1802 = vmatprep.subr.mxu0 0.0
    %1803 = vmatpush2.msra.mxu0 0.0
    %1804 = vmatprep.subr.mxu0 0.0
    %1805 = vmatpush2.msra.mxu0 0.0
    %1806 = vmatprep.mubr.f32.mxu0 0.0
    %1807 = vmatmul.mubr.f32.gmra.mxu0 %v1695
    %v1808 = vpop.f32.mrf.mxu0
    %v1809 = vadd.f32 %v1693, %v1808
    %v1810 = vpop.f32.mrf.mxu0
    %1811 = vmatprep.mubr.f32.mxu0 0.0
    %1812 = vmatmul.mubr.f32.gmra.mxu0 %v1698
    %v1813 = vpop.f32.mrf.mxu0
    %v1814 = vadd.f32 %v1693, %v1813
    %v1815 = vpop.f32.mrf.mxu0
    %1816 = vmatprep.mubr.f32.mxu0 0.0
    %1817 = vmatmul.mubr.f32.gmra.mxu0 %v1701
    %v1818 = vpop.f32.mrf.mxu0
    %v1819 = vadd.f32 %v1693, %v1818
    %v1820 = vpop.f32.mrf.mxu0
    %1821 = vmatprep.mubr.f32.mxu0 0.0
    %1822 = vmatmul.mubr.f32.gmra.mxu0 %v1704
    %v1823 = vpop.f32.mrf.mxu0
    %v1824 = vadd.f32 %v1693, %v1823
    %v1825 = vpop.f32.mrf.mxu0
    %1826 = vmatprep.mubr.f32.mxu0 0.0
    %1827 = vmatmul.mubr.f32.gmra.mxu0 %v1707
    %v1828 = vpop.f32.mrf.mxu0
    %v1829 = vadd.f32 %v1693, %v1828
    %v1830 = vpop.f32.mrf.mxu0
    %1831 = vmatprep.mubr.f32.mxu0 0.0
    %1832 = vmatmul.mubr.f32.gmra.mxu0 %v1710
    %v1833 = vpop.f32.mrf.mxu0
    %v1834 = vadd.f32 %v1693, %v1833
    %v1835 = vpop.f32.mrf.mxu0
    %1836 = vmatprep.mubr.f32.mxu0 0.0
    %1837 = vmatmul.mubr.f32.gmra.mxu0 %v1713
    %v1838 = vpop.f32.mrf.mxu0
    %v1839 = vadd.f32 %v1693, %v1838
    %v1840 = vpop.f32.mrf.mxu0
    %1841 = vmatprep.mubr.f32.mxu0 0.0
    %1842 = vmatmul.mubr.f32.gmra.mxu0 %v1716
    %v1843 = vpop.f32.mrf.mxu0
    %v1844 = vadd.f32 %v1693, %v1843
    %v1845 = vpop.f32.mrf.mxu0
    %1846 = vmatprep.mubr.f32.mxu0 0.0
    %1847 = vmatmul.mubr.f32.gmra.mxu0 %v1719
    %v1848 = vpop.f32.mrf.mxu0
    %v1849 = vadd.f32 %v1693, %v1848
    %v1850 = vpop.f32.mrf.mxu0
    %1851 = vmatprep.mubr.f32.mxu0 0.0
    %1852 = vmatmul.mubr.f32.gmra.mxu0 %v1722
    %v1853 = vpop.f32.mrf.mxu0
    %v1854 = vadd.f32 %v1693, %v1853
    %v1855 = vpop.f32.mrf.mxu0
    %1856 = vmatprep.mubr.f32.mxu0 0.0
    %1857 = vmatmul.mubr.f32.gmra.mxu0 %v1725
    %v1858 = vpop.f32.mrf.mxu0
    %v1859 = vadd.f32 %v1693, %v1858
    %v1860 = vpop.f32.mrf.mxu0
    %1861 = vmatprep.mubr.f32.mxu0 0.0
    %1862 = vmatmul.mubr.f32.gmra.mxu0 %v1728
    %v1863 = vpop.f32.mrf.mxu0
    %v1864 = vadd.f32 %v1693, %v1863
    %v1865 = vpop.f32.mrf.mxu0
    %1866 = vmatprep.mubr.f32.mxu0 0.0
    %1867 = vmatmul.mubr.f32.gmra.mxu0 %v1731
    %v1868 = vpop.f32.mrf.mxu0
    %v1869 = vadd.f32 %v1693, %v1868
    %v1870 = vpop.f32.mrf.mxu0
    %1871 = vmatprep.mubr.f32.mxu0 0.0
    %1872 = vmatmul.mubr.f32.gmra.mxu0 %v1734
    %v1873 = vpop.f32.mrf.mxu0
    %v1874 = vadd.f32 %v1693, %v1873
    %v1875 = vpop.f32.mrf.mxu0
    %1876 = vmatprep.mubr.f32.mxu0 0.0
    %1877 = vmatmul.mubr.f32.gmra.mxu0 %v1737
    %v1878 = vpop.f32.mrf.mxu0
    %v1879 = vadd.f32 %v1693, %v1878
    %v1880 = vpop.f32.mrf.mxu0
    %1881 = vmatprep.mubr.f32.mxu0 0.0
    %1882 = vmatmul.mubr.f32.gmra.mxu0 %v1740
    %v1883 = vpop.f32.mrf.mxu0
    %v1884 = vadd.f32 %v1693, %v1883
    %v1885 = vpop.f32.mrf.mxu0
    %1886 = vdwg.mxu0
    %v1887 = vmax.f32 %v1809, 0.0
    %v1888 = vmax.f32 %v1814, 0.0
    %v1889 = vmax.f32 %v1819, 0.0
    %v1890 = vmax.f32 %v1824, 0.0
    %v1891 = vmax.f32 %v1829, 0.0
    %v1892 = vmax.f32 %v1834, 0.0
    %v1893 = vmax.f32 %v1839, 0.0
    %v1894 = vmax.f32 %v1844, 0.0
    %v1895 = vmax.f32 %v1849, 0.0
    %v1896 = vmax.f32 %v1854, 0.0
    %v1897 = vmax.f32 %v1859, 0.0
    %v1898 = vmax.f32 %v1864, 0.0
    %v1899 = vmax.f32 %v1869, 0.0
    %v1900 = vmax.f32 %v1874, 0.0
    %v1901 = vmax.f32 %v1879, 0.0
    %v1902 = vmax.f32 %v1884, 0.0
    %v1919 = vrot.slane %v1887, 7
    %v1920 = vrot.slane %v1888, 7
    %v1921 = vrot.slane %v1889, 7
    %v1922 = vrot.slane %v1890, 7
    %v1923 = vrot.slane %v1891, 7
    %v1924 = vrot.slane %v1892, 7
    %v1925 = vrot.slane %v1893, 7
    %v1926 = vrot.slane %v1894, 7
    %v1927 = vrot.slane %v1895, 7
    %v1928 = vrot.slane %v1896, 7
    %v1929 = vrot.slane %v1897, 7
    %v1930 = vrot.slane %v1898, 7
    %v1931 = vrot.slane %v1899, 7
    %v1932 = vrot.slane %v1900, 7
    %v1933 = vrot.slane %v1901, 7
    %v1934 = vrot.slane %v1902, 7
    %v1951 = vsel %vm837, 0.0, %v1919
    %v1952 = vsel %vm837, 0.0, %v1920
    %v1953 = vsel %vm837, 0.0, %v1921
    %v1954 = vsel %vm837, 0.0, %v1922
    %v1955 = vsel %vm837, 0.0, %v1923
    %v1956 = vsel %vm837, 0.0, %v1924
    %v1957 = vsel %vm837, 0.0, %v1925
    %v1958 = vsel %vm837, 0.0, %v1926
    %v1959 = vsel %vm837, 0.0, %v1927
    %v1960 = vsel %vm837, 0.0, %v1928
    %v1961 = vsel %vm837, 0.0, %v1929
    %v1962 = vsel %vm837, 0.0, %v1930
    %v1963 = vsel %vm837, 0.0, %v1931
    %v1964 = vsel %vm837, 0.0, %v1932
    %v1965 = vsel %vm837, 0.0, %v1933
    %v1966 = vsel %vm837, 0.0, %v1934
    %v1967 = vrot.slane %v1887, 1
    %v1968 = vrot.slane %v1888, 1
    %v1969 = vrot.slane %v1889, 1
    %v1970 = vrot.slane %v1890, 1
    %v1971 = vrot.slane %v1891, 1
    %v1972 = vrot.slane %v1892, 1
    %v1973 = vrot.slane %v1893, 1
    %v1974 = vrot.slane %v1894, 1
    %v1975 = vrot.slane %v1895, 1
    %v1976 = vrot.slane %v1896, 1
    %v1977 = vrot.slane %v1897, 1
    %v1978 = vrot.slane %v1898, 1
    %v1979 = vrot.slane %v1899, 1
    %v1980 = vrot.slane %v1900, 1
    %v1981 = vrot.slane %v1901, 1
    %v1982 = vrot.slane %v1902, 1
    %vm1999 = vcmask 1046528
    %v2000 = vsel %vm1999, %v1967, 0.0
    %v2001 = vsel %vm1999, %v1968, 0.0
    %v2002 = vsel %vm1999, %v1969, 0.0
    %v2003 = vsel %vm1999, %v1970, 0.0
    %v2004 = vsel %vm1999, %v1971, 0.0
    %v2005 = vsel %vm1999, %v1972, 0.0
    %v2006 = vsel %vm1999, %v1973, 0.0
    %v2007 = vsel %vm1999, %v1974, 0.0
    %v2008 = vsel %vm1999, %v1975, 0.0
    %v2009 = vsel %vm1999, %v1976, 0.0
    %v2010 = vsel %vm1999, %v1977, 0.0
    %v2011 = vsel %vm1999, %v1978, 0.0
    %v2012 = vsel %vm1999, %v1979, 0.0
    %v2013 = vsel %vm1999, %v1980, 0.0
    %v2014 = vsel %vm1999, %v1981, 0.0
    %v2015 = vsel %vm1999, %v1982, 0.0
    %v2016 = vld [vmem:[%s2] sm:$0xff]
    %v2017 = vld [vmem:[%s2 + $0x8] sm:$0xff]
    %v2018 = vld [vmem:[%s2 + $0x10] sm:$0xff]
    %v2019 = vld [vmem:[%s2 + $0x18] sm:$0xff]
    %v2020 = vld [vmem:[%s2 + $0x20] sm:$0xff]
    %v2021 = vld [vmem:[%s2 + $0x28] sm:$0xff]
    %v2022 = vld [vmem:[%s2 + $0x30] sm:$0xff]
    %v2023 = vld [vmem:[%s2 + $0x38] sm:$0xff]
    %v2024 = vmul.f32 %v2016, 0.0
    %v2025 = vmul.f32 %v1951, %v2017
    %v2026 = vmul.f32 %v1952, %v2018
    %v2027 = vmul.f32 %v1953, %v2019
    %v2028 = vmul.f32 %v1954, %v2020
    %v2029 = vmul.f32 %v1955, %v2021
    %v2030 = vmul.f32 %v1956, %v2022
    %v2031 = vmul.f32 %v1957, %v2023
    %v2032 = vmul.f32 %v1959, %v2017
    %v2033 = vmul.f32 %v1960, %v2018
    %v2034 = vmul.f32 %v1961, %v2019
    %v2035 = vmul.f32 %v1962, %v2020
    %v2036 = vmul.f32 %v1963, %v2021
    %v2037 = vmul.f32 %v1964, %v2022
    %v2038 = vmul.f32 %v1965, %v2023
    %s2039 = scalar_lea.vmem %s2, 64
    %v2040 = vld [vmem:[%s2039] sm:$0xff]
    %v2041 = vld [vmem:[%s2039 + $0x8] sm:$0xff]
    %v2042 = vld [vmem:[%s2039 + $0x10] sm:$0xff]
    %v2043 = vld [vmem:[%s2039 + $0x18] sm:$0xff]
    %v2044 = vld [vmem:[%s2039 + $0x20] sm:$0xff]
    %v2045 = vld [vmem:[%s2039 + $0x28] sm:$0xff]
    %v2046 = vld [vmem:[%s2039 + $0x30] sm:$0xff]
    %v2047 = vld [vmem:[%s2039 + $0x38] sm:$0xff]
    %v2048 = vmul.f32 %v2040, 0.0
    %v2049 = vmul.f32 %v1887, %v2041
    %v2050 = vmul.f32 %v1888, %v2042
    %v2051 = vmul.f32 %v1889, %v2043
    %v2052 = vmul.f32 %v1890, %v2044
    %v2053 = vmul.f32 %v1891, %v2045
    %v2054 = vmul.f32 %v1892, %v2046
    %v2055 = vmul.f32 %v1893, %v2047
    %v2056 = vmul.f32 %v1895, %v2041
    %v2057 = vmul.f32 %v1896, %v2042
    %v2058 = vmul.f32 %v1897, %v2043
    %v2059 = vmul.f32 %v1898, %v2044
    %v2060 = vmul.f32 %v1899, %v2045
    %v2061 = vmul.f32 %v1900, %v2046
    %v2062 = vmul.f32 %v1901, %v2047
    %v2063 = vadd.f32 %v2024, %v2048
    %v2064 = vadd.f32 %v2025, %v2049
    %v2065 = vadd.f32 %v2026, %v2050
    %v2066 = vadd.f32 %v2027, %v2051
    %v2067 = vadd.f32 %v2028, %v2052
    %v2068 = vadd.f32 %v2029, %v2053
    %v2069 = vadd.f32 %v2030, %v2054
    %v2070 = vadd.f32 %v2031, %v2055
    %v2071 = vadd.f32 %v2032, %v2056
    %v2072 = vadd.f32 %v2033, %v2057
    %v2073 = vadd.f32 %v2034, %v2058
    %v2074 = vadd.f32 %v2035, %v2059
    %v2075 = vadd.f32 %v2036, %v2060
    %v2076 = vadd.f32 %v2037, %v2061
    %v2077 = vadd.f32 %v2038, %v2062
    %s2078 = scalar_lea.vmem %s2, 128
    %v2079 = vld [vmem:[%s2078] sm:$0xff]
    %v2080 = vld [vmem:[%s2078 + $0x8] sm:$0xff]
    %v2081 = vld [vmem:[%s2078 + $0x10] sm:$0xff]
    %v2082 = vld [vmem:[%s2078 + $0x18] sm:$0xff]
    %v2083 = vld [vmem:[%s2078 + $0x20] sm:$0xff]
    %v2084 = vld [vmem:[%s2078 + $0x28] sm:$0xff]
    %v2085 = vld [vmem:[%s2078 + $0x30] sm:$0xff]
    %v2086 = vld [vmem:[%s2078 + $0x38] sm:$0xff]
    %v2087 = vmul.f32 %v2079, 0.0
    %v2088 = vmul.f32 %v2000, %v2080
    %v2089 = vmul.f32 %v2001, %v2081
    %v2090 = vmul.f32 %v2002, %v2082
    %v2091 = vmul.f32 %v2003, %v2083
    %v2092 = vmul.f32 %v2004, %v2084
    %v2093 = vmul.f32 %v2005, %v2085
    %v2094 = vmul.f32 %v2006, %v2086
    %v2095 = vmul.f32 %v2008, %v2080
    %v2096 = vmul.f32 %v2009, %v2081
    %v2097 = vmul.f32 %v2010, %v2082
    %v2098 = vmul.f32 %v2011, %v2083
    %v2099 = vmul.f32 %v2012, %v2084
    %v2100 = vmul.f32 %v2013, %v2085
    %v2101 = vmul.f32 %v2014, %v2086
    %v2102 = vadd.f32 %v2063, %v2087
    %v2103 = vadd.f32 %v2064, %v2088
    %v2104 = vadd.f32 %v2065, %v2089
    %v2105 = vadd.f32 %v2066, %v2090
    %v2106 = vadd.f32 %v2067, %v2091
    %v2107 = vadd.f32 %v2068, %v2092
    %v2108 = vadd.f32 %v2069, %v2093
    %v2109 = vadd.f32 %v2070, %v2094
    %v2110 = vadd.f32 %v2071, %v2095
    %v2111 = vadd.f32 %v2072, %v2096
    %v2112 = vadd.f32 %v2073, %v2097
    %v2113 = vadd.f32 %v2074, %v2098
    %v2114 = vadd.f32 %v2075, %v2099
    %v2115 = vadd.f32 %v2076, %v2100
    %v2116 = vadd.f32 %v2077, %v2101
    %s2117 = scalar_lea.vmem %s2, 192
    %v2118 = vld [vmem:[%s2117] sm:$0xff]
    %v2119 = vld [vmem:[%s2117 + $0x8] sm:$0xff]
    %v2120 = vld [vmem:[%s2117 + $0x10] sm:$0xff]
    %v2121 = vld [vmem:[%s2117 + $0x18] sm:$0xff]
    %v2122 = vld [vmem:[%s2117 + $0x20] sm:$0xff]
    %v2123 = vld [vmem:[%s2117 + $0x28] sm:$0xff]
    %v2124 = vld [vmem:[%s2117 + $0x30] sm:$0xff]
    %v2125 = vld [vmem:[%s2117 + $0x38] sm:$0xff]
    %v2126 = vmul.f32 %v1951, %v2118
    %v2127 = vmul.f32 %v1952, %v2119
    %v2128 = vmul.f32 %v1953, %v2120
    %v2129 = vmul.f32 %v1954, %v2121
    %v2130 = vmul.f32 %v1955, %v2122
    %v2131 = vmul.f32 %v1956, %v2123
    %v2132 = vmul.f32 %v1957, %v2124
    %v2133 = vmul.f32 %v1958, %v2125
    %v2134 = vmul.f32 %v1959, %v2118
    %v2135 = vmul.f32 %v1960, %v2119
    %v2136 = vmul.f32 %v1961, %v2120
    %v2137 = vmul.f32 %v1962, %v2121
    %v2138 = vmul.f32 %v1963, %v2122
    %v2139 = vmul.f32 %v1964, %v2123
    %v2140 = vmul.f32 %v1965, %v2124
    %v2141 = vmul.f32 %v1966, %v2125
    %v2142 = vadd.f32 %v2102, %v2126
    %v2143 = vadd.f32 %v2103, %v2127
    %v2144 = vadd.f32 %v2104, %v2128
    %v2145 = vadd.f32 %v2105, %v2129
    %v2146 = vadd.f32 %v2106, %v2130
    %v2147 = vadd.f32 %v2107, %v2131
    %v2148 = vadd.f32 %v2108, %v2132
    %v2149 = vadd.f32 %v2109, %v2133
    %v2150 = vadd.f32 %v2102, %v2134
    %v2151 = vadd.f32 %v2110, %v2135
    %v2152 = vadd.f32 %v2111, %v2136
    %v2153 = vadd.f32 %v2112, %v2137
    %v2154 = vadd.f32 %v2113, %v2138
    %v2155 = vadd.f32 %v2114, %v2139
    %v2156 = vadd.f32 %v2115, %v2140
    %v2157 = vadd.f32 %v2116, %v2141
    %s2158 = scalar_lea.vmem %s2, 256
    %v2159 = vld [vmem:[%s2158] sm:$0xff]
    %v2160 = vld [vmem:[%s2158 + $0x8] sm:$0xff]
    %v2161 = vld [vmem:[%s2158 + $0x10] sm:$0xff]
    %v2162 = vld [vmem:[%s2158 + $0x18] sm:$0xff]
    %v2163 = vld [vmem:[%s2158 + $0x20] sm:$0xff]
    %v2164 = vld [vmem:[%s2158 + $0x28] sm:$0xff]
    %v2165 = vld [vmem:[%s2158 + $0x30] sm:$0xff]
    %v2166 = vld [vmem:[%s2158 + $0x38] sm:$0xff]
    %v2167 = vmul.f32 %v1887, %v2159
    %v2168 = vmul.f32 %v1888, %v2160
    %v2169 = vmul.f32 %v1889, %v2161
    %v2170 = vmul.f32 %v1890, %v2162
    %v2171 = vmul.f32 %v1891, %v2163
    %v2172 = vmul.f32 %v1892, %v2164
    %v2173 = vmul.f32 %v1893, %v2165
    %v2174 = vmul.f32 %v1894, %v2166
    %v2175 = vmul.f32 %v1895, %v2159
    %v2176 = vmul.f32 %v1896, %v2160
    %v2177 = vmul.f32 %v1897, %v2161
    %v2178 = vmul.f32 %v1898, %v2162
    %v2179 = vmul.f32 %v1899, %v2163
    %v2180 = vmul.f32 %v1900, %v2164
    %v2181 = vmul.f32 %v1901, %v2165
    %v2182 = vmul.f32 %v1902, %v2166
    %v2183 = vadd.f32 %v2142, %v2167
    %v2184 = vadd.f32 %v2143, %v2168
    %v2185 = vadd.f32 %v2144, %v2169
    %v2186 = vadd.f32 %v2145, %v2170
    %v2187 = vadd.f32 %v2146, %v2171
    %v2188 = vadd.f32 %v2147, %v2172
    %v2189 = vadd.f32 %v2148, %v2173
    %v2190 = vadd.f32 %v2149, %v2174
    %v2191 = vadd.f32 %v2150, %v2175
    %v2192 = vadd.f32 %v2151, %v2176
    %v2193 = vadd.f32 %v2152, %v2177
    %v2194 = vadd.f32 %v2153, %v2178
    %v2195 = vadd.f32 %v2154, %v2179
    %v2196 = vadd.f32 %v2155, %v2180
    %v2197 = vadd.f32 %v2156, %v2181
    %v2198 = vadd.f32 %v2157, %v2182
    %s2199 = scalar_lea.vmem %s2, 320
    %v2200 = vld [vmem:[%s2199] sm:$0xff]
    %v2201 = vld [vmem:[%s2199 + $0x8] sm:$0xff]
    %v2202 = vld [vmem:[%s2199 + $0x10] sm:$0xff]
    %v2203 = vld [vmem:[%s2199 + $0x18] sm:$0xff]
    %v2204 = vld [vmem:[%s2199 + $0x20] sm:$0xff]
    %v2205 = vld [vmem:[%s2199 + $0x28] sm:$0xff]
    %v2206 = vld [vmem:[%s2199 + $0x30] sm:$0xff]
    %v2207 = vld [vmem:[%s2199 + $0x38] sm:$0xff]
    %v2208 = vmul.f32 %v2000, %v2200
    %v2209 = vmul.f32 %v2001, %v2201
    %v2210 = vmul.f32 %v2002, %v2202
    %v2211 = vmul.f32 %v2003, %v2203
    %v2212 = vmul.f32 %v2004, %v2204
    %v2213 = vmul.f32 %v2005, %v2205
    %v2214 = vmul.f32 %v2006, %v2206
    %v2215 = vmul.f32 %v2007, %v2207
    %v2216 = vmul.f32 %v2008, %v2200
    %v2217 = vmul.f32 %v2009, %v2201
    %v2218 = vmul.f32 %v2010, %v2202
    %v2219 = vmul.f32 %v2011, %v2203
    %v2220 = vmul.f32 %v2012, %v2204
    %v2221 = vmul.f32 %v2013, %v2205
    %v2222 = vmul.f32 %v2014, %v2206
    %v2223 = vmul.f32 %v2015, %v2207
    %v2224 = vadd.f32 %v2183, %v2208
    %v2225 = vadd.f32 %v2184, %v2209
    %v2226 = vadd.f32 %v2185, %v2210
    %v2227 = vadd.f32 %v2186, %v2211
    %v2228 = vadd.f32 %v2187, %v2212
    %v2229 = vadd.f32 %v2188, %v2213
    %v2230 = vadd.f32 %v2189, %v2214
    %v2231 = vadd.f32 %v2190, %v2215
    %v2232 = vadd.f32 %v2191, %v2216
    %v2233 = vadd.f32 %v2192, %v2217
    %v2234 = vadd.f32 %v2193, %v2218
    %v2235 = vadd.f32 %v2194, %v2219
    %v2236 = vadd.f32 %v2195, %v2220
    %v2237 = vadd.f32 %v2196, %v2221
    %v2238 = vadd.f32 %v2197, %v2222
    %v2239 = vadd.f32 %v2198, %v2223
    %s2240 = scalar_lea.vmem %s2, 384
    %v2241 = vld [vmem:[%s2240] sm:$0xff]
    %v2242 = vld [vmem:[%s2240 + $0x8] sm:$0xff]
    %v2243 = vld [vmem:[%s2240 + $0x10] sm:$0xff]
    %v2244 = vld [vmem:[%s2240 + $0x18] sm:$0xff]
    %v2245 = vld [vmem:[%s2240 + $0x20] sm:$0xff]
    %v2246 = vld [vmem:[%s2240 + $0x28] sm:$0xff]
    %v2247 = vld [vmem:[%s2240 + $0x30] sm:$0xff]
    %v2248 = vld [vmem:[%s2240 + $0x38] sm:$0xff]
    %v2249 = vmul.f32 %v1952, %v2241
    %v2250 = vmul.f32 %v1953, %v2242
    %v2251 = vmul.f32 %v1954, %v2243
    %v2252 = vmul.f32 %v1955, %v2244
    %v2253 = vmul.f32 %v1956, %v2245
    %v2254 = vmul.f32 %v1957, %v2246
    %v2255 = vmul.f32 %v1958, %v2247
    %v2256 = vmul.f32 %v2248, 0.0
    %v2257 = vmul.f32 %v1960, %v2241
    %v2258 = vmul.f32 %v1961, %v2242
    %v2259 = vmul.f32 %v1962, %v2243
    %v2260 = vmul.f32 %v1963, %v2244
    %v2261 = vmul.f32 %v1964, %v2245
    %v2262 = vmul.f32 %v1965, %v2246
    %v2263 = vmul.f32 %v1966, %v2247
    %v2264 = vadd.f32 %v2224, %v2249
    %v2265 = vadd.f32 %v2225, %v2250
    %v2266 = vadd.f32 %v2226, %v2251
    %v2267 = vadd.f32 %v2227, %v2252
    %v2268 = vadd.f32 %v2228, %v2253
    %v2269 = vadd.f32 %v2229, %v2254
    %v2270 = vadd.f32 %v2230, %v2255
    %v2271 = vadd.f32 %v2231, %v2256
    %v2272 = vadd.f32 %v2232, %v2257
    %v2273 = vadd.f32 %v2233, %v2258
    %v2274 = vadd.f32 %v2234, %v2259
    %v2275 = vadd.f32 %v2235, %v2260
    %v2276 = vadd.f32 %v2236, %v2261
    %v2277 = vadd.f32 %v2237, %v2262
    %v2278 = vadd.f32 %v2238, %v2263
    %v2279 = vadd.f32 %v2239, %v2256
    %s2280 = scalar_lea.vmem %s2, 448
    %v2281 = vld [vmem:[%s2280] sm:$0xff]
    %v2282 = vld [vmem:[%s2280 + $0x8] sm:$0xff]
    %v2283 = vld [vmem:[%s2280 + $0x10] sm:$0xff]
    %v2284 = vld [vmem:[%s2280 + $0x18] sm:$0xff]
    %v2285 = vld [vmem:[%s2280 + $0x20] sm:$0xff]
    %v2286 = vld [vmem:[%s2280 + $0x28] sm:$0xff]
    %v2287 = vld [vmem:[%s2280 + $0x30] sm:$0xff]
    %v2288 = vld [vmem:[%s2280 + $0x38] sm:$0xff]
    %v2289 = vmul.f32 %v1888, %v2281
    %v2290 = vmul.f32 %v1889, %v2282
    %v2291 = vmul.f32 %v1890, %v2283
    %v2292 = vmul.f32 %v1891, %v2284
    %v2293 = vmul.f32 %v1892, %v2285
    %v2294 = vmul.f32 %v1893, %v2286
    %v2295 = vmul.f32 %v1894, %v2287
    %v2296 = vmul.f32 %v2288, 0.0
    %v2297 = vmul.f32 %v1896, %v2281
    %v2298 = vmul.f32 %v1897, %v2282
    %v2299 = vmul.f32 %v1898, %v2283
    %v2300 = vmul.f32 %v1899, %v2284
    %v2301 = vmul.f32 %v1900, %v2285
    %v2302 = vmul.f32 %v1901, %v2286
    %v2303 = vmul.f32 %v1902, %v2287
    %v2304 = vadd.f32 %v2264, %v2289
    %v2305 = vadd.f32 %v2265, %v2290
    %v2306 = vadd.f32 %v2266, %v2291
    %v2307 = vadd.f32 %v2267, %v2292
    %v2308 = vadd.f32 %v2268, %v2293
    %v2309 = vadd.f32 %v2269, %v2294
    %v2310 = vadd.f32 %v2270, %v2295
    %v2311 = vadd.f32 %v2271, %v2296
    %v2312 = vadd.f32 %v2272, %v2297
    %v2313 = vadd.f32 %v2273, %v2298
    %v2314 = vadd.f32 %v2274, %v2299
    %v2315 = vadd.f32 %v2275, %v2300
    %v2316 = vadd.f32 %v2276, %v2301
    %v2317 = vadd.f32 %v2277, %v2302
    %v2318 = vadd.f32 %v2278, %v2303
    %v2319 = vadd.f32 %v2279, %v2296
    %s2320 = scalar_lea.vmem %s2, 512
    %v2321 = vld [vmem:[%s2320] sm:$0xff]
    %v2322 = vld [vmem:[%s2320 + $0x8] sm:$0xff]
    %v2323 = vld [vmem:[%s2320 + $0x10] sm:$0xff]
    %v2324 = vld [vmem:[%s2320 + $0x18] sm:$0xff]
    %v2325 = vld [vmem:[%s2320 + $0x20] sm:$0xff]
    %v2326 = vld [vmem:[%s2320 + $0x28] sm:$0xff]
    %v2327 = vld [vmem:[%s2320 + $0x30] sm:$0xff]
    %v2328 = vld [vmem:[%s2320 + $0x38] sm:$0xff]
    %v2329 = vmul.f32 %v2001, %v2321
    %v2330 = vmul.f32 %v2002, %v2322
    %v2331 = vmul.f32 %v2003, %v2323
    %v2332 = vmul.f32 %v2004, %v2324
    %v2333 = vmul.f32 %v2005, %v2325
    %v2334 = vmul.f32 %v2006, %v2326
    %v2335 = vmul.f32 %v2007, %v2327
    %v2336 = vmul.f32 %v2328, 0.0
    %v2337 = vmul.f32 %v2009, %v2321
    %v2338 = vmul.f32 %v2010, %v2322
    %v2339 = vmul.f32 %v2011, %v2323
    %v2340 = vmul.f32 %v2012, %v2324
    %v2341 = vmul.f32 %v2013, %v2325
    %v2342 = vmul.f32 %v2014, %v2326
    %v2343 = vmul.f32 %v2015, %v2327
    %v2344 = vadd.f32 %v2304, %v2329
    %v2345 = vadd.f32 %v2305, %v2330
    %v2346 = vadd.f32 %v2306, %v2331
    %v2347 = vadd.f32 %v2307, %v2332
    %v2348 = vadd.f32 %v2308, %v2333
    %v2349 = vadd.f32 %v2309, %v2334
    %v2350 = vadd.f32 %v2310, %v2335
    %v2351 = vadd.f32 %v2311, %v2336
    %v2352 = vadd.f32 %v2312, %v2337
    %v2353 = vadd.f32 %v2313, %v2338
    %v2354 = vadd.f32 %v2314, %v2339
    %v2355 = vadd.f32 %v2315, %v2340
    %v2356 = vadd.f32 %v2316, %v2341
    %v2357 = vadd.f32 %v2317, %v2342
    %v2358 = vadd.f32 %v2318, %v2343
    %v2359 = vadd.f32 %v2319, %v2336
    %s2360 = scalar_lea.vmem %s2, 576
    %v2361 = vld [vmem:[%s2360] sm:$0xff]
    %v2362 = vld [vmem:[%s2360 + $0x8] sm:$0xff]
    %v2363 = vld [vmem:[%s2360 + $0x10] sm:$0xff]
    %v2364 = vld [vmem:[%s2360 + $0x18] sm:$0xff]
    %v2365 = vld [vmem:[%s2360 + $0x20] sm:$0xff]
    %v2366 = vld [vmem:[%s2360 + $0x28] sm:$0xff]
    %v2367 = vld [vmem:[%s2360 + $0x30] sm:$0xff]
    %v2368 = vld [vmem:[%s2360 + $0x38] sm:$0xff]
    %v2369 = vadd.f32 %v2344, %v2361
    %v2370 = vadd.f32 %v2345, %v2362
    %v2371 = vadd.f32 %v2346, %v2363
    %v2372 = vadd.f32 %v2347, %v2364
    %v2373 = vadd.f32 %v2348, %v2365
    %v2374 = vadd.f32 %v2349, %v2366
    %v2375 = vadd.f32 %v2350, %v2367
    %v2376 = vadd.f32 %v2351, %v2368
    %v2377 = vadd.f32 %v2352, %v2361
    %v2378 = vadd.f32 %v2353, %v2362
    %v2379 = vadd.f32 %v2354, %v2363
    %v2380 = vadd.f32 %v2355, %v2364
    %v2381 = vadd.f32 %v2356, %v2365
    %v2382 = vadd.f32 %v2357, %v2366
    %v2383 = vadd.f32 %v2358, %v2367
    %v2384 = vadd.f32 %v2359, %v2368
    %v2385 = vmax.f32 %v2369, 0.0
    %v2386 = vmax.f32 %v2370, 0.0
    %v2387 = vmax.f32 %v2371, 0.0
    %v2388 = vmax.f32 %v2372, 0.0
    %v2389 = vmax.f32 %v2373, 0.0
    %v2390 = vmax.f32 %v2374, 0.0
    %v2391 = vmax.f32 %v2375, 0.0
    %v2392 = vmax.f32 %v2376, 0.0
    %v2393 = vmax.f32 %v2377, 0.0
    %v2394 = vmax.f32 %v2378, 0.0
    %v2395 = vmax.f32 %v2379, 0.0
    %v2396 = vmax.f32 %v2380, 0.0
    %v2397 = vmax.f32 %v2381, 0.0
    %v2398 = vmax.f32 %v2382, 0.0
    %v2399 = vmax.f32 %v2383, 0.0
    %v2400 = vmax.f32 %v2384, 0.0
    %vm2401 = vcmask 60416
    %v2402 = vsel %vm2401, %v2385, 0.0
    %v2403 = vsel %vm2401, %v2386, 0.0
    %v2404 = vadd.f32 %v2402, %v2403
    %v2405 = vsel %vm2401, %v2387, 0.0
    %v2406 = vadd.f32 %v2404, %v2405
    %v2407 = vsel %vm2401, %v2388, 0.0
    %v2408 = vadd.f32 %v2406, %v2407
    %v2409 = vrot.slane %v2408, 4
    %v2410 = vadd.f32 %v2408, %v2409
    %v2411 = vrot.slane %v2410, 2
    %v2412 = vadd.f32 %v2410, %v2411
    %v2413 = vrot.slane %v2412, 1
    %v2414 = vadd.f32 %v2412, %v2413
    %v2415 = vsel %vm2401, %v2393, 0.0
    %v2416 = vsel %vm2401, %v2394, 0.0
    %v2417 = vadd.f32 %v2415, %v2416
    %v2418 = vsel %vm2401, %v2395, 0.0
    %v2419 = vadd.f32 %v2417, %v2418
    %v2420 = vsel %vm2401, %v2396, 0.0
    %v2421 = vadd.f32 %v2419, %v2420
    %v2422 = vrot.slane %v2421, 4
    %v2423 = vadd.f32 %v2421, %v2422
    %v2424 = vrot.slane %v2423, 2
    %v2425 = vadd.f32 %v2423, %v2424
    %v2426 = vrot.slane %v2425, 1
    %v2427 = vadd.f32 %v2425, %v2426
    %v2436 = vrot.slane %v2385, 4
    %v2437 = vrot.slane %v2386, 4
    %v2438 = vrot.slane %v2387, 4
    %v2439 = vrot.slane %v2388, 4
    %v2440 = vrot.slane %v2393, 4
    %v2441 = vrot.slane %v2394, 4
    %v2442 = vrot.slane %v2395, 4
    %v2443 = vrot.slane %v2396, 4
    %v2452 = vsel %vm2401, %v2436, 0.0
    %v2453 = vsel %vm2401, %v2437, 0.0
    %v2454 = vadd.f32 %v2452, %v2453
    %v2455 = vsel %vm2401, %v2438, 0.0
    %v2456 = vadd.f32 %v2454, %v2455
    %v2457 = vsel %vm2401, %v2439, 0.0
    %v2458 = vadd.f32 %v2456, %v2457
    %v2459 = vrot.slane %v2458, 4
    %v2460 = vadd.f32 %v2458, %v2459
    %v2461 = vrot.slane %v2460, 2
    %v2462 = vadd.f32 %v2460, %v2461
    %v2463 = vrot.slane %v2462, 1
    %v2464 = vadd.f32 %v2462, %v2463
    %v2465 = vsel %vm2401, %v2440, 0.0
    %v2466 = vsel %vm2401, %v2441, 0.0
    %v2467 = vadd.f32 %v2465, %v2466
    %v2468 = vsel %vm2401, %v2442, 0.0
    %v2469 = vadd.f32 %v2467, %v2468
    %v2470 = vsel %vm2401, %v2443, 0.0
    %v2471 = vadd.f32 %v2469, %v2470
    %v2472 = vrot.slane %v2471, 4
    %v2473 = vadd.f32 %v2471, %v2472
    %v2474 = vrot.slane %v2473, 2
    %v2475 = vadd.f32 %v2473, %v2474
    %v2476 = vrot.slane %v2475, 1
    %v2477 = vadd.f32 %v2475, %v2476
    %v2478 = vsel %vm2401, %v2389, 0.0
    %v2479 = vsel %vm2401, %v2390, 0.0
    %v2480 = vadd.f32 %v2478, %v2479
    %v2481 = vsel %vm2401, %v2391, 0.0
    %v2482 = vadd.f32 %v2480, %v2481
    %v2483 = vsel %vm2401, %v2392, 0.0
    %v2484 = vadd.f32 %v2482, %v2483
    %v2485 = vrot.slane %v2484, 4
    %v2486 = vadd.f32 %v2484, %v2485
    %v2487 = vrot.slane %v2486, 2
    %v2488 = vadd.f32 %v2486, %v2487
    %v2489 = vrot.slane %v2488, 1
    %v2490 = vadd.f32 %v2488, %v2489
    %v2491 = vsel %vm2401, %v2397, 0.0
    %v2492 = vsel %vm2401, %v2398, 0.0
    %v2493 = vadd.f32 %v2491, %v2492
    %v2494 = vsel %vm2401, %v2399, 0.0
    %v2495 = vadd.f32 %v2493, %v2494
    %v2496 = vsel %vm2401, %v2400, 0.0
    %v2497 = vadd.f32 %v2495, %v2496
    %v2498 = vrot.slane %v2497, 4
    %v2499 = vadd.f32 %v2497, %v2498
    %v2500 = vrot.slane %v2499, 2
    %v2501 = vadd.f32 %v2499, %v2500
    %v2502 = vrot.slane %v2501, 1
    %v2503 = vadd.f32 %v2501, %v2502
    %v2512 = vrot.slane %v2389, 4
    %v2513 = vrot.slane %v2390, 4
    %v2514 = vrot.slane %v2391, 4
    %v2515 = vrot.slane %v2392, 4
    %v2516 = vrot.slane %v2397, 4
    %v2517 = vrot.slane %v2398, 4
    %v2518 = vrot.slane %v2399, 4
    %v2519 = vrot.slane %v2400, 4
    %v2528 = vsel %vm2401, %v2512, 0.0
    %v2529 = vsel %vm2401, %v2513, 0.0
    %v2530 = vadd.f32 %v2528, %v2529
    %v2531 = vsel %vm2401, %v2514, 0.0
    %v2532 = vadd.f32 %v2530, %v2531
    %v2533 = vsel %vm2401, %v2515, 0.0
    %v2534 = vadd.f32 %v2532, %v2533
    %v2535 = vrot.slane %v2534, 4
    %v2536 = vadd.f32 %v2534, %v2535
    %v2537 = vrot.slane %v2536, 2
    %v2538 = vadd.f32 %v2536, %v2537
    %v2539 = vrot.slane %v2538, 1
    %v2540 = vadd.f32 %v2538, %v2539
    %v2541 = vsel %vm2401, %v2516, 0.0
    %v2542 = vsel %vm2401, %v2517, 0.0
    %v2543 = vadd.f32 %v2541, %v2542
    %v2544 = vsel %vm2401, %v2518, 0.0
    %v2545 = vadd.f32 %v2543, %v2544
    %v2546 = vsel %vm2401, %v2519, 0.0
    %v2547 = vadd.f32 %v2545, %v2546
    %v2548 = vrot.slane %v2547, 4
    %v2549 = vadd.f32 %v2547, %v2548
    %v2550 = vrot.slane %v2549, 2
    %v2551 = vadd.f32 %v2549, %v2550
    %v2552 = vrot.slane %v2551, 1
    %v2553 = vadd.f32 %v2551, %v2552
    %v2556 = vsel %vm1475, %v2427, %v2414
    %v2560 = vsel %vm1475, %v2477, %v2464
    %2561 = vrot.lane.b32.xlu0 %v2560, 8
    %v2562 = vpop.permute.xlu0 %2561
    %v2566 = vsel %vm1475, %v2503, %v2490
    %2567 = vrot.lane.b32.xlu0 %v2566, 16
    %v2568 = vpop.permute.xlu0 %2567
    %v2572 = vsel %vm1475, %v2553, %v2540
    %2573 = vrot.lane.b32.xlu0 %v2572, 24
    %v2574 = vpop.permute.xlu0 %2573
    %v2576 = vsel %vm1210, %v2556, %v2562
    %v2577 = vsel %vm1420, %v2576, %v2568
    %vm2578 = vcmask 195584
    %v2579 = vsel %vm2578, %v2577, %v2574
    %vm2580 = vcmask 254976
    %2581 = vst.msk [vmem:[#allocation2] sm:$0x3] %vm2580, %v2579
    // Predicated region
    $region14: #{tpu_custom_call.1} parent=1 // pred_check
      _
    $region15: #{tpu_custom_call.1} parent=1 // pred_check_branch
      %2583 = sbr.rel (0) target = $region17
    $region16: #{tpu_custom_call.1} parent=1 // pred_region
      %s2585 = ssub.s32 32, 32
      %2586 = vsyncadd [#allocation3], %s2585
      %s2588 = sshll.u32 [#allocation2], 4
      %s2589 = int_to_ptr.vmem [resolvable:$true] %s2588
      %2591 = dma.vmem_to_hbm [thread:$0]  %s2589, 32, %s3, [#allocation3]
    $region17: #{tpu_custom_call.1} parent=1 // pred_fallthru
      _
    // Predicated region
    $region18: #{tpu_custom_call.1} parent=1 // pred_check
      _
    $region19: #{tpu_custom_call.1} parent=1 // pred_check_branch
      %2593 = sbr.rel (0) target = $region21
    $region20: #{tpu_custom_call.1} parent=1 // pred_region
      %2594 = dma.done [#allocation3], 32
    $region21: #{tpu_custom_call.1} parent=1 // pred_fallthru
      _
    %2595 = vsyncpa [#allocation3], 1

</llo_original>
